<compile_context>
chip_gen: v5e
topology: v5e:2x2
jax: 0.10.0
libtpu: 0.0.40
codegen_flags: <defaults>
</compile_context>

<pallas_src>
import jax
import jax.numpy as jnp
import numpy as np
from jax.experimental import pallas as pl
from jax.experimental.pallas import tpu as pltpu

# Original module hardcodes image_size = 64; identical formula, small spatial
# size for the runnable demo.
image_size = 16
label_dim = 50
num_classes = 102

HID1, HID2 = 512, 256
OUT_PAD = 128          # last Linear's output width (1) padded to a lane-dense 128
DEFAULT_TK = 2048      # K tile target for the image-part contraction


def _round_up(x, m):
    return ((x + m - 1) // m) * m


def _cdiv(a, b):
    return (a + b - 1) // b


def _disc_kernel(xi_ref, xe_ref, w1i_ref, w1e_ref, s1_ref, b1_ref,
                 w2_ref, b2_ref, w3_ref, b3_ref, out_ref, acc_ref):
    k = pl.program_id(1)

    @pl.when(k == 0)
    def _():
        acc_ref[...] = jnp.zeros_like(acc_ref)

    # Weight-only int8 for the big Linear: dequant to bf16 on-chip (VPU) so the
    # MXU feed is plain bf16 x bf16 on every TPU generation; the per-output-
    # channel scale is folded into the f32 epilogue below.
    acc_ref[...] += jnp.dot(xi_ref[...], w1i_ref[...].astype(jnp.bfloat16),
                            preferred_element_type=jnp.float32)

    @pl.when(k == pl.num_programs(1) - 1)
    def _():
        h1 = (acc_ref[...] * s1_ref[...]                       # dequant scale
              + jnp.dot(xe_ref[...], w1e_ref[...],
                        preferred_element_type=jnp.float32)    # embedding rows
              + b1_ref[...])
        h1 = jnp.where(h1 > 0, h1, 0.2 * h1)                   # LeakyReLU(0.2)
        # Dropout(0.3) -> identity at inference.
        h2 = jnp.dot(h1.astype(jnp.bfloat16), w2_ref[...],
                     preferred_element_type=jnp.float32) + b2_ref[...]
        h2 = jnp.where(h2 > 0, h2, 0.2 * h2)                   # LeakyReLU(0.2)
        h3 = jnp.dot(h2.astype(jnp.bfloat16), w3_ref[...],
                     preferred_element_type=jnp.float32) + b3_ref[...]
        out_ref[...] = jax.nn.sigmoid(h3)                      # Sigmoid


def prepare_params(params, *, max_tk=DEFAULT_TK):
    """One-time weight prep (split/pad/quantize). Call ONCE, reuse every step."""
    w1, b1 = params["w1"], params["b1"]
    w2, b2 = params["w2"], params["b2"]
    w3, b3 = params["w3"], params["b3"]
    K = w1.shape[0]
    K_img = K - label_dim            # rows multiplying the flattened image
    D_emb = label_dim                # rows multiplying the label embedding

    # --- image-row block: per-output-channel symmetric int8 quantization ----
    w1_img = w1[:K_img]
    s1 = jnp.maximum(jnp.max(jnp.abs(w1_img), axis=0), 1e-8) / 127.0
    w1_img_q = jnp.clip(jnp.round(w1_img / s1[None, :]), -127, 127).astype(jnp.int8)

    # K tiling: pad only to a 128 multiple and pick a tile that divides it
    # (no round_up(K, tk) over-padding -> <2% zero rows in the W1 stream).
    K_img_pad = _round_up(K_img, 128)
    tk = min(max_tk, K_img_pad)
    n_k = _cdiv(K_img_pad, tk)
    tk = _round_up(_cdiv(K_img_pad, n_k), 128)
    n_k = _cdiv(K_img_pad, tk)
    K_img_pad = n_k * tk

    w1i = jnp.zeros((K_img_pad, HID1), jnp.int8).at[:K_img].set(w1_img_q)
    # --- embedding-row block is tiny (50x512): keep exact-ish in bf16 --------
    w1e = w1[K_img:].astype(jnp.bfloat16)

    w2_p = w2.astype(jnp.bfloat16)
    w3_p = jnp.zeros((HID2, OUT_PAD), jnp.bfloat16).at[:, :1].set(
        w3.astype(jnp.bfloat16))
    s1_p = s1.reshape(1, HID1).astype(jnp.float32)
    b1_p = b1.reshape(1, HID1).astype(jnp.float32)
    b2_p = b2.reshape(1, HID2).astype(jnp.float32)
    b3_p = jnp.zeros((1, OUT_PAD), jnp.float32).at[:, :1].set(
        b3.reshape(1, 1).astype(jnp.float32))

    return dict(emb=params["emb"], w1i=w1i, w1e=w1e, s1=s1_p, b1=b1_p,
                w2=w2_p, b2=b2_p, w3=w3_p, b3=b3_p,
                K_img=K_img, K_img_pad=K_img_pad, D_emb=D_emb, tk=tk, n_k=n_k)


def discriminator_forward(img, labels, prepped):
    K_img, K_img_pad = prepped["K_img"], prepped["K_img_pad"]
    tk, n_k, D_emb = prepped["tk"], prepped["n_k"], prepped["D_emb"]
    B = img.shape[0]

    # Glue (matches torch semantics): flatten + embedding lookup.
    img_flat = img.reshape(B, -1).astype(jnp.bfloat16)                # (B, 3HW)
    label_emb = jnp.take(prepped["emb"], labels, axis=0).astype(jnp.bfloat16)

    # bf16 packs two rows per sublane -> pad batch to a multiple of 16.
    B_pad = _round_up(max(B, 16), 16)
    if B_pad > 128:
        TB = 128
        B_pad = _round_up(B_pad, TB)
    else:
        TB = B_pad
    n_b = B_pad // TB

    # Only materialize padded copies when actually needed; at serving shapes
    # (B%16==0, 3*H*W%128==0) these are pure dtype casts, no extra HBM
    # round-trip of a concatenated/padded buffer.
    if B_pad != B or K_img_pad != K_img:
        xi = jnp.zeros((B_pad, K_img_pad), jnp.bfloat16).at[:B, :K_img].set(img_flat)
    else:
        xi = img_flat
    if B_pad != B:
        xe = jnp.zeros((B_pad, D_emb), jnp.bfloat16).at[:B, :].set(label_emb)
    else:
        xe = label_emb

    flops = 2 * B_pad * (K_img_pad * HID1 + D_emb * HID1
                         + HID1 * HID2 + HID2 * OUT_PAD)
    bytes_accessed = (
        xi.size * 2 + xe.size * 2
        + n_b * (prepped["w1i"].size                      # int8 (1 B/elem)
                 + prepped["w1e"].size * 2
                 + prepped["w2"].size * 2 + prepped["w3"].size * 2
                 + (2 * HID1 + HID2 + OUT_PAD) * 4)
        + B_pad * OUT_PAD * 4)
    cost = pl.CostEstimate(flops=flops,
                           transcendentals=B_pad * OUT_PAD,
                           bytes_accessed=bytes_accessed)

    out = pl.pallas_call(
        _disc_kernel,
        out_shape=jax.ShapeDtypeStruct((B_pad, OUT_PAD), jnp.float32),
        grid_spec=pltpu.PrefetchScalarGridSpec(
            num_scalar_prefetch=0,
            grid=(n_b, n_k),
            in_specs=[
                pl.BlockSpec((TB, tk), lambda b, k: (b, k)),         # image tile
                pl.BlockSpec((TB, D_emb), lambda b, k: (b, 0)),      # label emb
                pl.BlockSpec((tk, HID1), lambda b, k: (k, 0)),       # W1[img] int8
                pl.BlockSpec((D_emb, HID1), lambda b, k: (0, 0)),    # W1[emb] bf16
                pl.BlockSpec((1, HID1), lambda b, k: (0, 0)),        # scale
                pl.BlockSpec((1, HID1), lambda b, k: (0, 0)),        # b1
                pl.BlockSpec((HID1, HID2), lambda b, k: (0, 0)),     # W2
                pl.BlockSpec((1, HID2), lambda b, k: (0, 0)),        # b2
                pl.BlockSpec((HID2, OUT_PAD), lambda b, k: (0, 0)),  # W3 (padded)
                pl.BlockSpec((1, OUT_PAD), lambda b, k: (0, 0)),     # b3 (padded)
            ],
            out_specs=pl.BlockSpec((TB, OUT_PAD), lambda b, k: (b, 0)),
            scratch_shapes=[pltpu.VMEM((TB, HID1), jnp.float32)],
        ),
        compiler_params=pltpu.CompilerParams(
            # batch tiles are independent (megacore-shardable); K reduction
            # must stay sequential.
            dimension_semantics=("parallel", "arbitrary")),
        cost_estimate=cost,
    )(xi, xe, prepped["w1i"], prepped["w1e"], prepped["s1"], prepped["b1"],
      prepped["w2"], prepped["b2"], prepped["w3"], prepped["b3"])

    return out[:B, :1]


def init_params(key):
    """Deterministic synthetic params with the same shapes as the nn.Module."""
    ks = jax.random.split(key, 7)
    input_dim = 3 * image_size * image_size + label_dim
    emb = jax.random.normal(ks[0], (num_classes, label_dim), jnp.float32)

    def linear(kw, kb, fan_in, fan_out):
        bound = float(1.0 / np.sqrt(fan_in))
        w = jax.random.uniform(kw, (fan_in, fan_out), jnp.float32, -bound, bound)
        b = jax.random.uniform(kb, (fan_out,), jnp.float32, -bound, bound)
        return w, b

    w1, b1 = linear(ks[1], ks[2], input_dim, HID1)
    w2, b2 = linear(ks[3], ks[4], HID1, HID2)
    w3, b3 = linear(ks[5], ks[6], HID2, 1)
    return dict(emb=emb, w1=w1, b1=b1, w2=w2, b2=b2, w3=w3, b3=b3)


def reference_forward(img, labels, params):
    B = img.shape[0]
    x = jnp.concatenate([img.reshape(B, -1).astype(jnp.float32),
                         jnp.take(params["emb"], labels, axis=0)], axis=1)
    h = x @ params["w1"] + params["b1"]
    h = jnp.where(h > 0, h, 0.2 * h)
    h = h @ params["w2"] + params["b2"]
    h = jnp.where(h > 0, h, 0.2 * h)
    h = h @ params["w3"] + params["b3"]
    return jax.nn.sigmoid(h)


if __name__ == "__main__":
    key = jax.random.PRNGKey(0)
    pkey, ikey, lkey = jax.random.split(key, 3)
    params = init_params(pkey)
    prepped = prepare_params(params)          # one-time weight prep

    B = 4
    img = jax.random.normal(ikey, (B, 3, image_size, image_size), jnp.float32)
    labels = jax.random.randint(lkey, (B,), 0, num_classes, dtype=jnp.int32)

    validity = discriminator_forward(img, labels, prepped)
    validity = jax.block_until_ready(validity)

    ref = reference_forward(img, labels, params)
    assert validity.shape == (B, 1)
    # int8 W1 (per-channel scales) + bf16 activation stream, f32 accumulation.
    np.testing.assert_allclose(np.asarray(validity), np.asarray(ref),
                               rtol=2e-2, atol=2e-2)
    print("KERNEL_OK")
</pallas_src>

<mosaic_0001>
module attributes {stable_mosaic.version = 11 : i64} {
  func.func @_disc_kernel(%arg0: i32, %arg1: i32, %arg2: memref<16x768xbf16, #tpu.memory_space<vmem>>, %arg3: memref<16x50xbf16, #tpu.memory_space<vmem>>, %arg4: memref<768x512xi8, #tpu.memory_space<vmem>>, %arg5: memref<50x512xbf16, #tpu.memory_space<vmem>>, %arg6: memref<1x512xf32, #tpu.memory_space<vmem>>, %arg7: memref<1x512xf32, #tpu.memory_space<vmem>>, %arg8: memref<512x256xbf16, #tpu.memory_space<vmem>>, %arg9: memref<1x256xf32, #tpu.memory_space<vmem>>, %arg10: memref<256x128xbf16, #tpu.memory_space<vmem>>, %arg11: memref<1x128xf32, #tpu.memory_space<vmem>>, %arg12: memref<16x128xf32, #tpu.memory_space<vmem>>, %arg13: memref<16x512xf32, #tpu.memory_space<vmem>>) attributes {dimension_semantics = [#tpu.dimension_semantics<parallel>, #tpu.dimension_semantics<arbitrary>], iteration_bounds = array<i64: 1, 1>, scalar_prefetch = 0 : i64, scratch_operands = 1 : i64, tpu.core_type = #tpu.core_type<tc>, window_params = [{transform_indices = @transform_0, window_bounds = array<i64: 16, 768>}, {transform_indices = @transform_1, window_bounds = array<i64: 16, 50>}, {transform_indices = @transform_2, window_bounds = array<i64: 768, 512>}, {pipeline_mode = #tpu.pipeline_mode<synchronous>, transform_indices = @transform_3, window_bounds = array<i64: 50, 512>}, {pipeline_mode = #tpu.pipeline_mode<synchronous>, transform_indices = @transform_4, window_bounds = array<i64: 1, 512>}, {pipeline_mode = #tpu.pipeline_mode<synchronous>, transform_indices = @transform_5, window_bounds = array<i64: 1, 512>}, {pipeline_mode = #tpu.pipeline_mode<synchronous>, transform_indices = @transform_6, window_bounds = array<i64: 512, 256>}, {pipeline_mode = #tpu.pipeline_mode<synchronous>, transform_indices = @transform_7, window_bounds = array<i64: 1, 256>}, {pipeline_mode = #tpu.pipeline_mode<synchronous>, transform_indices = @transform_8, window_bounds = array<i64: 256, 128>}, {pipeline_mode = #tpu.pipeline_mode<synchronous>, transform_indices = @transform_9, window_bounds = array<i64: 1, 128>}, {transform_indices = @transform_10, window_bounds = array<i64: 16, 128>}]} {
    %c0_i32 = arith.constant 0 : i32
    %0 = arith.cmpi eq, %arg1, %c0_i32 : i32
    %1 = arith.extui %0 : i1 to i32
    %c0_i32_0 = arith.constant 0 : i32
    %2 = arith.cmpi ne, %1, %c0_i32_0 : i32
    scf.if %2 {
      %cst_10 = arith.constant 0.000000e+00 : f32
      %13 = vector.broadcast %cst_10 : f32 to vector<16x512xf32>
      %c0_11 = arith.constant 0 : index
      %c0_12 = arith.constant 0 : index
      %14 = vector.load %arg13[%c0_11, %c0_12] : memref<16x512xf32, #tpu.memory_space<vmem>>, vector<16x512xf32>
      tpu.vector_store %arg13[%c0_11, %c0_12], %13 {strides = array<i32>} : memref<16x512xf32, #tpu.memory_space<vmem>>, vector<16x512xf32>,
    } else {
    }
    %c0 = arith.constant 0 : index
    %c0_1 = arith.constant 0 : index
    %3 = vector.load %arg13[%c0, %c0_1] : memref<16x512xf32, #tpu.memory_space<vmem>>, vector<16x512xf32>
    %c0_2 = arith.constant 0 : index
    %c0_3 = arith.constant 0 : index
    %4 = vector.load %arg2[%c0_2, %c0_3] : memref<16x768xbf16, #tpu.memory_space<vmem>>, vector<16x768xbf16>
    %c0_4 = arith.constant 0 : index
    %c0_5 = arith.constant 0 : index
    %5 = vector.load %arg4[%c0_4, %c0_5] : memref<768x512xi8, #tpu.memory_space<vmem>>, vector<768x512xi8>
    %6 = arith.sitofp %5 : vector<768x512xi8> to vector<768x512xbf16>
    %cst = arith.constant dense<0.000000e+00> : vector<16x512xf32>
    %7 = tpu.matmul %4, %6, %cst {dimension_numbers = #tpu.dot_dimension_numbers<[1], [0], [0], [1], [0, 0, 1, 1], [], []>} : vector<16x768xbf16>, vector<768x512xbf16>, vector<16x512xf32> -> vector<16x512xf32>
    %8 = arith.addf %3, %7 : vector<16x512xf32>
    %c0_6 = arith.constant 0 : index
    %c0_7 = arith.constant 0 : index
    %9 = vector.load %arg13[%c0_6, %c0_7] : memref<16x512xf32, #tpu.memory_space<vmem>>, vector<16x512xf32>
    tpu.vector_store %arg13[%c0_6, %c0_7], %8 {strides = array<i32>} : memref<16x512xf32, #tpu.memory_space<vmem>>, vector<16x512xf32>,
    %c0_i32_8 = arith.constant 0 : i32
    %10 = arith.cmpi eq, %arg1, %c0_i32_8 : i32
    %11 = arith.extui %10 : i1 to i32
    %c0_i32_9 = arith.constant 0 : i32
    %12 = arith.cmpi ne, %11, %c0_i32_9 : i32
    scf.if %12 {
      %c0_10 = arith.constant 0 : index
      %c0_11 = arith.constant 0 : index
      %13 = vector.load %arg13[%c0_10, %c0_11] : memref<16x512xf32, #tpu.memory_space<vmem>>, vector<16x512xf32>
      %c0_12 = arith.constant 0 : index
      %c0_13 = arith.constant 0 : index
      %14 = vector.load %arg6[%c0_12, %c0_13] : memref<1x512xf32, #tpu.memory_space<vmem>>, vector<1x512xf32>
      %15 = vector.broadcast %14 : vector<1x512xf32> to vector<16x512xf32>
      %16 = arith.mulf %13, %15 : vector<16x512xf32>
      %c0_14 = arith.constant 0 : index
      %c0_15 = arith.constant 0 : index
      %17 = vector.load %arg3[%c0_14, %c0_15] : memref<16x50xbf16, #tpu.memory_space<vmem>>, vector<16x50xbf16>
      %c0_16 = arith.constant 0 : index
      %c0_17 = arith.constant 0 : index
      %18 = vector.load %arg5[%c0_16, %c0_17] : memref<50x512xbf16, #tpu.memory_space<vmem>>, vector<50x512xbf16>
      %cst_18 = arith.constant dense<0.000000e+00> : vector<16x512xf32>
      %19 = tpu.matmul %17, %18, %cst_18 {dimension_numbers = #tpu.dot_dimension_numbers<[1], [0], [0], [1], [0, 0, 1, 1], [], []>} : vector<16x50xbf16>, vector<50x512xbf16>, vector<16x512xf32> -> vector<16x512xf32>
      %20 = arith.addf %16, %19 : vector<16x512xf32>
      %c0_19 = arith.constant 0 : index
      %c0_20 = arith.constant 0 : index
      %21 = vector.load %arg7[%c0_19, %c0_20] : memref<1x512xf32, #tpu.memory_space<vmem>>, vector<1x512xf32>
      %22 = vector.broadcast %21 : vector<1x512xf32> to vector<16x512xf32>
      %23 = arith.addf %20, %22 : vector<16x512xf32>
      %cst_21 = arith.constant 0.000000e+00 : f32
      %24 = vector.broadcast %cst_21 : f32 to vector<16x512xf32>
      %25 = arith.cmpf ogt, %23, %24 : vector<16x512xf32>
      %cst_22 = arith.constant 2.000000e-01 : f32
      %26 = vector.broadcast %cst_22 : f32 to vector<16x512xf32>
      %27 = arith.mulf %26, %23 : vector<16x512xf32>
      %28 = arith.select %25, %23, %27 : vector<16x512xi1>, vector<16x512xf32>
      %29 = arith.truncf %28 : vector<16x512xf32> to vector<16x512xbf16>
      %c0_23 = arith.constant 0 : index
      %c0_24 = arith.constant 0 : index
      %30 = vector.load %arg8[%c0_23, %c0_24] : memref<512x256xbf16, #tpu.memory_space<vmem>>, vector<512x256xbf16>
      %cst_25 = arith.constant dense<0.000000e+00> : vector<16x256xf32>
      %31 = tpu.matmul %29, %30, %cst_25 {dimension_numbers = #tpu.dot_dimension_numbers<[1], [0], [0], [1], [0, 0, 1, 1], [], []>} : vector<16x512xbf16>, vector<512x256xbf16>, vector<16x256xf32> -> vector<16x256xf32>
      %c0_26 = arith.constant 0 : index
      %c0_27 = arith.constant 0 : index
      %32 = vector.load %arg9[%c0_26, %c0_27] : memref<1x256xf32, #tpu.memory_space<vmem>>, vector<1x256xf32>
      %33 = vector.broadcast %32 : vector<1x256xf32> to vector<16x256xf32>
      %34 = arith.addf %31, %33 : vector<16x256xf32>
      %cst_28 = arith.constant 0.000000e+00 : f32
      %35 = vector.broadcast %cst_28 : f32 to vector<16x256xf32>
      %36 = arith.cmpf ogt, %34, %35 : vector<16x256xf32>
      %cst_29 = arith.constant 2.000000e-01 : f32
      %37 = vector.broadcast %cst_29 : f32 to vector<16x256xf32>
      %38 = arith.mulf %37, %34 : vector<16x256xf32>
      %39 = arith.select %36, %34, %38 : vector<16x256xi1>, vector<16x256xf32>
      %40 = arith.truncf %39 : vector<16x256xf32> to vector<16x256xbf16>
      %c0_30 = arith.constant 0 : index
      %c0_31 = arith.constant 0 : index
      %41 = vector.load %arg10[%c0_30, %c0_31] : memref<256x128xbf16, #tpu.memory_space<vmem>>, vector<256x128xbf16>
      %cst_32 = arith.constant dense<0.000000e+00> : vector<16x128xf32>
      %42 = tpu.matmul %40, %41, %cst_32 {dimension_numbers = #tpu.dot_dimension_numbers<[1], [0], [0], [1], [0, 0, 1, 1], [], []>} : vector<16x256xbf16>, vector<256x128xbf16>, vector<16x128xf32> -> vector<16x128xf32>
      %c0_33 = arith.constant 0 : index
      %c0_34 = arith.constant 0 : index
      %43 = vector.load %arg11[%c0_33, %c0_34] : memref<1x128xf32, #tpu.memory_space<vmem>>, vector<1x128xf32>
      %44 = vector.broadcast %43 : vector<1x128xf32> to vector<16x128xf32>
      %45 = arith.addf %42, %44 : vector<16x128xf32>
      %46 = arith.negf %45 : vector<16x128xf32>
      %47 = math.exp %46 : vector<16x128xf32>
      %cst_35 = arith.constant 1.000000e+00 : f32
      %48 = vector.broadcast %cst_35 : f32 to vector<16x128xf32>
      %49 = arith.addf %48, %47 : vector<16x128xf32>
      %50 = arith.divf %48, %49 : vector<16x128xf32>
      %c0_36 = arith.constant 0 : index
      %c0_37 = arith.constant 0 : index
      %51 = vector.load %arg12[%c0_36, %c0_37] : memref<16x128xf32, #tpu.memory_space<vmem>>, vector<16x128xf32>
      tpu.vector_store %arg12[%c0_36, %c0_37], %50 {strides = array<i32>} : memref<16x128xf32, #tpu.memory_space<vmem>>, vector<16x128xf32>,
    } else {
    }
    return
  }
  func.func @transform_0(%arg0: i32, %arg1: i32) -> (i32, i32) {
    %c0_i32 = arith.constant 0 : i32
    return %arg0, %arg1 : i32, i32
  }
  func.func @transform_1(%arg0: i32, %arg1: i32) -> (i32, i32) {
    %c0_i32 = arith.constant 0 : i32
    %c0_i32_0 = arith.constant 0 : i32
    return %arg0, %c0_i32 : i32, i32
  }
  func.func @transform_2(%arg0: i32, %arg1: i32) -> (i32, i32) {
    %c0_i32 = arith.constant 0 : i32
    %c0_i32_0 = arith.constant 0 : i32
    return %arg1, %c0_i32 : i32, i32
  }
  func.func @transform_3(%arg0: i32, %arg1: i32) -> (i32, i32) {
    %c0_i32 = arith.constant 0 : i32
    %c0_i32_0 = arith.constant 0 : i32
    %c0_i32_1 = arith.constant 0 : i32
    return %c0_i32, %c0_i32_0 : i32, i32
  }
  func.func @transform_4(%arg0: i32, %arg1: i32) -> (i32, i32) {
    %c0_i32 = arith.constant 0 : i32
    %c0_i32_0 = arith.constant 0 : i32
    %c0_i32_1 = arith.constant 0 : i32
    return %c0_i32, %c0_i32_0 : i32, i32
  }
  func.func @transform_5(%arg0: i32, %arg1: i32) -> (i32, i32) {
    %c0_i32 = arith.constant 0 : i32
    %c0_i32_0 = arith.constant 0 : i32
    %c0_i32_1 = arith.constant 0 : i32
    return %c0_i32, %c0_i32_0 : i32, i32
  }
  func.func @transform_6(%arg0: i32, %arg1: i32) -> (i32, i32) {
    %c0_i32 = arith.constant 0 : i32
    %c0_i32_0 = arith.constant 0 : i32
    %c0_i32_1 = arith.constant 0 : i32
    return %c0_i32, %c0_i32_0 : i32, i32
  }
  func.func @transform_7(%arg0: i32, %arg1: i32) -> (i32, i32) {
    %c0_i32 = arith.constant 0 : i32
    %c0_i32_0 = arith.constant 0 : i32
    %c0_i32_1 = arith.constant 0 : i32
    return %c0_i32, %c0_i32_0 : i32, i32
  }
  func.func @transform_8(%arg0: i32, %arg1: i32) -> (i32, i32) {
    %c0_i32 = arith.constant 0 : i32
    %c0_i32_0 = arith.constant 0 : i32
    %c0_i32_1 = arith.constant 0 : i32
    return %c0_i32, %c0_i32_0 : i32, i32
  }
  func.func @transform_9(%arg0: i32, %arg1: i32) -> (i32, i32) {
    %c0_i32 = arith.constant 0 : i32
    %c0_i32_0 = arith.constant 0 : i32
    %c0_i32_1 = arith.constant 0 : i32
    return %c0_i32, %c0_i32_0 : i32, i32
  }
  func.func @transform_10(%arg0: i32, %arg1: i32) -> (i32, i32) {
    %c0_i32 = arith.constant 0 : i32
    %c0_i32_0 = arith.constant 0 : i32
    return %arg0, %c0_i32 : i32, i32
  }
}

</mosaic_0001>

<llo_original>
// kernel: tpu_custom_call.1
$region0: #{tpu_custom_call.1}
  #allocation0 [shape = 'u32[]', space=smem, size = 0x4, offset = 0x4, fixed_abs, tag = 'smem constant byte address 0x4 - core index']
  #allocation1 [shape = 'u32[72,128]{1,0:T(1,128)}', space=vmem, size = 0x9000, scoped, tag = 'internal scratch']
  #allocation2 [shape = 'f32[16,512]{1,0:T(8,128)}', space=vmem, size = 0x8000, scoped, tag = 'scratch operand']
  %s0 = inlined_call_operand.hbm [shape: bf16[16,768], index: 0, kind: input, shape index: {}]
  %s1 = inlined_call_operand.hbm [shape: bf16[16,50], index: 1, kind: input, shape index: {}]
  %s2 = inlined_call_operand.hbm [shape: s8[768,512], index: 2, kind: input, shape index: {}]
  %s3 = inlined_call_operand.hbm [shape: bf16[50,512], index: 3, kind: input, shape index: {}]
  %s4 = inlined_call_operand.hbm [shape: f32[1,512], index: 4, kind: input, shape index: {}]
  %s5 = inlined_call_operand.vmem [shape: f32[1,512], index: 5, kind: input, shape index: {}]
  %s6 = inlined_call_operand.hbm [shape: bf16[512,256], index: 6, kind: input, shape index: {}]
  %s7 = inlined_call_operand.vmem [shape: f32[1,256], index: 7, kind: input, shape index: {}]
  %s8 = inlined_call_operand.hbm [shape: bf16[256,128], index: 8, kind: input, shape index: {}]
  %s9 = inlined_call_operand.vmem [shape: f32[1,128], index: 9, kind: input, shape index: {}]
  %s10 = inlined_call_operand.hbm [shape: f32[16,128], index: 10, kind: output, shape index: {}]
  %s11 = sld [smem:[#allocation0]]
  $region86: #{tpu_custom_call.1} parent=0
    _
  %s13 = ssub.s32 1, %s11
  %s14 = scalar_select 0, %s13, %s11
  $region1: #{tpu_custom_call.1} parent=0
    #allocation3 [shape = 'u8[24576]{0}', space=vmem, size = 0x6000, scoped, tag = 'input window, operand 0, single buffered']
    #allocation4 [shape = 's32[1]{0}', space=sflag, size = 0x4, scoped, tag = 'scoped memory for tpu_custom_call.1']
    #allocation5 [shape = 's32[1]{0}', space=sflag, size = 0x4, scoped, tag = 'scoped memory for tpu_custom_call.1']
    #allocation6 [shape = 'u8[4096]{0}', space=vmem, size = 0x1000, scoped, tag = 'input window, operand 1, single buffered']
    #allocation7 [shape = 's32[1]{0}', space=sflag, size = 0x4, scoped, tag = 'scoped memory for tpu_custom_call.1']
    #allocation8 [shape = 'u8[393216]{0}', space=vmem, size = 0x60000, scoped, tag = 'input window, operand 2, single buffered']
    #allocation9 [shape = 'u8[57344]{0}', space=vmem, size = 0xe000, scoped, tag = 'input window, operand 3, single buffered']
    #allocation10 [shape = 's32[1]{0}', space=sflag, size = 0x4, scoped, tag = 'scoped memory for tpu_custom_call.1']
    #allocation11 [shape = 'u8[2048]{0}', space=vmem, size = 0x800, scoped, tag = 'input window, operand 4, single buffered']
    #allocation12 [shape = 'u8[262144]{0}', space=vmem, size = 0x40000, scoped, tag = 'input window, operand 6, single buffered']
    #allocation13 [shape = 's32[1]{0}', space=sflag, size = 0x4, scoped, tag = 'scoped memory for tpu_custom_call.1']
    #allocation14 [shape = 'u8[65536]{0}', space=vmem, size = 0x10000, scoped, tag = 'input window, operand 8, single buffered']
    #allocation15 [shape = 'u8[8192]{0}', space=vmem, size = 0x2000, scoped, tag = 'output window, operand 0, single buffered']
    %15 = vsyncpa [#allocation4], 0
    %16 = vsyncpa [#allocation7], 0
    %17 = vsyncpa [#allocation10], 0
    %18 = vsyncpa [#allocation13], 0
    %19 = vsyncpa [#allocation5], 0
    // Predicated region
    $region2: #{tpu_custom_call.1} parent=1 // pred_check
      _
    $region3: #{tpu_custom_call.1} parent=1 // pred_check_branch
      %21 = sbr.rel (0) target = $region5
    $region4: #{tpu_custom_call.1} parent=1 // pred_region
      %23 = vsyncadd [#allocation4], 0
      %s24 = sshll.u32 %s0, 4
      %s25 = int_to_ptr.hbm [resolvable:$true] %s24
      %s26 = sshll.u32 [#allocation3], 4
      %s27 = int_to_ptr.vmem [resolvable:$true] %s26
      %32 = dma.hbm_to_vmem [thread:$0]  %s25, 768, %s27, [#allocation4], 384, 384, 24
    $region5: #{tpu_custom_call.1} parent=1 // pred_fallthru
      _
    // Predicated region
    $region6: #{tpu_custom_call.1} parent=1 // pred_check
      _
    $region7: #{tpu_custom_call.1} parent=1 // pred_check_branch
      %34 = sbr.rel (0) target = $region9
    $region8: #{tpu_custom_call.1} parent=1 // pred_region
      %36 = vsyncadd [#allocation7], 0
      %s37 = sshll.u32 %s1, 4
      %s38 = int_to_ptr.hbm [resolvable:$true] %s37
      %s39 = sshll.u32 [#allocation6], 4
      %s40 = int_to_ptr.vmem [resolvable:$true] %s39
      %45 = dma.hbm_to_vmem [thread:$0]  %s38, 128, %s40, [#allocation7], 64, 64, 4
    $region9: #{tpu_custom_call.1} parent=1 // pred_fallthru
      _
    // Predicated region
    $region10: #{tpu_custom_call.1} parent=1 // pred_check
      _
    $region11: #{tpu_custom_call.1} parent=1 // pred_check_branch
      %47 = sbr.rel (0) target = $region13
    $region12: #{tpu_custom_call.1} parent=1 // pred_region
      %49 = vsyncadd [#allocation7], 0
      %s50 = sshll.u32 %s2, 4
      %s51 = int_to_ptr.hbm [resolvable:$true] %s50
      %s52 = sshll.u32 [#allocation8], 4
      %s53 = int_to_ptr.vmem [resolvable:$true] %s52
      %58 = dma.hbm_to_vmem [thread:$0]  %s51, 12288, %s53, [#allocation7], 512, 512, 32
    $region13: #{tpu_custom_call.1} parent=1 // pred_fallthru
      _
    // Predicated region
    $region14: #{tpu_custom_call.1} parent=1 // pred_check
      _
    $region15: #{tpu_custom_call.1} parent=1 // pred_check_branch
      %60 = sbr.rel (0) target = $region17
    $region16: #{tpu_custom_call.1} parent=1 // pred_region
      %62 = vsyncadd [#allocation10], 0
      %s63 = sshll.u32 %s3, 4
      %s64 = int_to_ptr.hbm [resolvable:$true] %s63
      %s65 = sshll.u32 [#allocation9], 4
      %s66 = int_to_ptr.vmem [resolvable:$true] %s65
      %71 = dma.hbm_to_vmem [thread:$0]  %s64, 1792, %s66, [#allocation10], 256, 256, 16
    $region17: #{tpu_custom_call.1} parent=1 // pred_fallthru
      _
    // Predicated region
    $region18: #{tpu_custom_call.1} parent=1 // pred_check
      _
    $region19: #{tpu_custom_call.1} parent=1 // pred_check_branch
      %73 = sbr.rel (0) target = $region21
    $region20: #{tpu_custom_call.1} parent=1 // pred_region
      %75 = vsyncadd [#allocation10], 0
      %s77 = sshll.u32 %s4, 4
      %s78 = int_to_ptr.hbm [resolvable:$true] %s77
      %s79 = sshll.u32 [#allocation11], 4
      %s80 = int_to_ptr.vmem [resolvable:$true] %s79
      %82 = dma.hbm_to_vmem [thread:$0]  %s78, 64, %s80, [#allocation10]
    $region21: #{tpu_custom_call.1} parent=1 // pred_fallthru
      _
    // Predicated region
    $region22: #{tpu_custom_call.1} parent=1 // pred_check
      _
    $region23: #{tpu_custom_call.1} parent=1 // pred_check_branch
      %84 = sbr.rel (0) target = $region25
    $region24: #{tpu_custom_call.1} parent=1 // pred_region
      _
    $region25: #{tpu_custom_call.1} parent=1 // pred_fallthru
      _
    // Predicated region
    $region26: #{tpu_custom_call.1} parent=1 // pred_check
      _
    $region27: #{tpu_custom_call.1} parent=1 // pred_check_branch
      %86 = sbr.rel (0) target = $region29
    $region28: #{tpu_custom_call.1} parent=1 // pred_region
      %88 = vsyncadd [#allocation13], 0
      %s89 = sshll.u32 %s6, 4
      %s90 = int_to_ptr.hbm [resolvable:$true] %s89
      %s91 = sshll.u32 [#allocation12], 4
      %s92 = int_to_ptr.vmem [resolvable:$true] %s91
      %97 = dma.hbm_to_vmem [thread:$0]  %s90, 8192, %s92, [#allocation13], 128, 128, 8
    $region29: #{tpu_custom_call.1} parent=1 // pred_fallthru
      _
    // Predicated region
    $region30: #{tpu_custom_call.1} parent=1 // pred_check
      _
    $region31: #{tpu_custom_call.1} parent=1 // pred_check_branch
      %99 = sbr.rel (0) target = $region33
    $region32: #{tpu_custom_call.1} parent=1 // pred_region
      _
    $region33: #{tpu_custom_call.1} parent=1 // pred_fallthru
      _
    // Predicated region
    $region34: #{tpu_custom_call.1} parent=1 // pred_check
      _
    $region35: #{tpu_custom_call.1} parent=1 // pred_check_branch
      %101 = sbr.rel (0) target = $region37
    $region36: #{tpu_custom_call.1} parent=1 // pred_region
      %103 = vsyncadd [#allocation13], 0
      %s104 = sshll.u32 %s8, 4
      %s105 = int_to_ptr.hbm [resolvable:$true] %s104
      %s106 = sshll.u32 [#allocation14], 4
      %s107 = int_to_ptr.vmem [resolvable:$true] %s106
      %112 = dma.hbm_to_vmem [thread:$0]  %s105, 2048, %s107, [#allocation13], 64, 64, 4
    $region37: #{tpu_custom_call.1} parent=1 // pred_fallthru
      _
    // Predicated region
    $region38: #{tpu_custom_call.1} parent=1 // pred_check
      _
    $region39: #{tpu_custom_call.1} parent=1 // pred_check_branch
      %114 = sbr.rel (0) target = $region41
    $region40: #{tpu_custom_call.1} parent=1 // pred_region
      _
    $region41: #{tpu_custom_call.1} parent=1 // pred_fallthru
      _
    // Predicated region
    $region42: #{tpu_custom_call.1} parent=1 // pred_check
      _
    $region43: #{tpu_custom_call.1} parent=1 // pred_check_branch
      %116 = sbr.rel (0) target = $region45
    $region44: #{tpu_custom_call.1} parent=1 // pred_region
      %118 = dma.done [#allocation4], 768
    $region45: #{tpu_custom_call.1} parent=1 // pred_fallthru
      _
    // Predicated region
    $region46: #{tpu_custom_call.1} parent=1 // pred_check
      _
    $region47: #{tpu_custom_call.1} parent=1 // pred_check_branch
      %120 = sbr.rel (0) target = $region49
    $region48: #{tpu_custom_call.1} parent=1 // pred_region
      %122 = dma.done [#allocation7], 128
    $region49: #{tpu_custom_call.1} parent=1 // pred_fallthru
      _
    // Predicated region
    $region50: #{tpu_custom_call.1} parent=1 // pred_check
      _
    $region51: #{tpu_custom_call.1} parent=1 // pred_check_branch
      %124 = sbr.rel (0) target = $region53
    $region52: #{tpu_custom_call.1} parent=1 // pred_region
      %126 = dma.done [#allocation7], 12288
    $region53: #{tpu_custom_call.1} parent=1 // pred_fallthru
      _
    // Predicated region
    $region54: #{tpu_custom_call.1} parent=1 // pred_check
      _
    $region55: #{tpu_custom_call.1} parent=1 // pred_check_branch
      %128 = sbr.rel (0) target = $region57
    $region56: #{tpu_custom_call.1} parent=1 // pred_region
      %130 = dma.done [#allocation10], 1792
    $region57: #{tpu_custom_call.1} parent=1 // pred_fallthru
      _
    // Predicated region
    $region58: #{tpu_custom_call.1} parent=1 // pred_check
      _
    $region59: #{tpu_custom_call.1} parent=1 // pred_check_branch
      %132 = sbr.rel (0) target = $region61
    $region60: #{tpu_custom_call.1} parent=1 // pred_region
      %134 = dma.done [#allocation10], 64
    $region61: #{tpu_custom_call.1} parent=1 // pred_fallthru
      _
    // Predicated region
    $region62: #{tpu_custom_call.1} parent=1 // pred_check
      _
    $region63: #{tpu_custom_call.1} parent=1 // pred_check_branch
      %136 = sbr.rel (0) target = $region65
    $region64: #{tpu_custom_call.1} parent=1 // pred_region
      %138 = dma.done [#allocation13], 8192
    $region65: #{tpu_custom_call.1} parent=1 // pred_fallthru
      _
    // Predicated region
    $region66: #{tpu_custom_call.1} parent=1 // pred_check
      _
    $region67: #{tpu_custom_call.1} parent=1 // pred_check_branch
      %140 = sbr.rel (0) target = $region69
    $region68: #{tpu_custom_call.1} parent=1 // pred_region
      %142 = dma.done [#allocation13], 2048
    $region69: #{tpu_custom_call.1} parent=1 // pred_fallthru
      _
    %p144 = scmp.eq.s32.totalorder 0, 0
    // Predicated region
    $region70: #{tpu_custom_call.1} parent=1 // pred_check
      %p145 = pneg %p144
    $region71: #{tpu_custom_call.1} parent=1 // pred_check_branch
      %147 = sbr.rel (%p145) target = $region73
    $region72: #{tpu_custom_call.1} parent=1 // pred_region
      %148 = vst [vmem:[#allocation2] sm:$0xff] 0.0
      %149 = vst [vmem:[#allocation2 + $0x8] sm:$0xff] 0.0
      %150 = vst [vmem:[#allocation2 + $0x10] sm:$0xff] 0.0
      %151 = vst [vmem:[#allocation2 + $0x18] sm:$0xff] 0.0
      %152 = vst [vmem:[#allocation2 + $0x20] sm:$0xff] 0.0
      %153 = vst [vmem:[#allocation2 + $0x28] sm:$0xff] 0.0
      %154 = vst [vmem:[#allocation2 + $0x30] sm:$0xff] 0.0
      %155 = vst [vmem:[#allocation2 + $0x38] sm:$0xff] 0.0
    $region73: #{tpu_custom_call.1} parent=1 // pred_fallthru
      _
    %v156 = vld [vmem:[#allocation2] sm:$0xff]
    %v157 = vld [vmem:[#allocation2 + $0x8] sm:$0xff]
    %v158 = vld [vmem:[#allocation2 + $0x10] sm:$0xff]
    %v159 = vld [vmem:[#allocation2 + $0x18] sm:$0xff]
    %v160 = vld [vmem:[#allocation2 + $0x20] sm:$0xff]
    %v161 = vld [vmem:[#allocation2 + $0x28] sm:$0xff]
    %v162 = vld [vmem:[#allocation2 + $0x30] sm:$0xff]
    %v163 = vld [vmem:[#allocation2 + $0x38] sm:$0xff]
    %v164 = vld [vmem:[#allocation3] sm:$0xff]
    %v165 = vld [vmem:[#allocation3 + $0x8] sm:$0xff]
    %v166 = vld [vmem:[#allocation3 + $0x10] sm:$0xff]
    %v167 = vld [vmem:[#allocation3 + $0x18] sm:$0xff]
    %v168 = vld [vmem:[#allocation3 + $0x20] sm:$0xff]
    %v169 = vld [vmem:[#allocation3 + $0x28] sm:$0xff]
    %v170 = vld [vmem:[#allocation8] sm:$0xff]
    %v171 = vld [vmem:[#allocation8 + $0x8] sm:$0xff]
    %v172 = vld [vmem:[#allocation8 + $0x10] sm:$0xff]
    %v173 = vld [vmem:[#allocation8 + $0x18] sm:$0xff]
    %v174 = vld [vmem:[#allocation8 + $0x20] sm:$0xff]
    %v175 = vld [vmem:[#allocation8 + $0x28] sm:$0xff]
    %v176 = vld [vmem:[#allocation8 + $0x30] sm:$0xff]
    %v177 = vld [vmem:[#allocation8 + $0x38] sm:$0xff]
    %v178 = vld [vmem:[#allocation8 + $0x40] sm:$0xff]
    %v179 = vld [vmem:[#allocation8 + $0x48] sm:$0xff]
    %v180 = vld [vmem:[#allocation8 + $0x50] sm:$0xff]
    %v181 = vld [vmem:[#allocation8 + $0x58] sm:$0xff]
    %v182 = vld [vmem:[#allocation8 + $0x60] sm:$0xff]
    %v183 = vld [vmem:[#allocation8 + $0x68] sm:$0xff]
    %v184 = vld [vmem:[#allocation8 + $0x70] sm:$0xff]
    %v185 = vld [vmem:[#allocation8 + $0x78] sm:$0xff]
    %v186 = vld [vmem:[#allocation8 + $0x80] sm:$0xff]
    %v187 = vld [vmem:[#allocation8 + $0x88] sm:$0xff]
    %v188 = vld [vmem:[#allocation8 + $0x90] sm:$0xff]
    %v189 = vld [vmem:[#allocation8 + $0x98] sm:$0xff]
    %v190 = vld [vmem:[#allocation8 + $0xa0] sm:$0xff]
    %v191 = vld [vmem:[#allocation8 + $0xa8] sm:$0xff]
    %v192 = vld [vmem:[#allocation8 + $0xb0] sm:$0xff]
    %v193 = vld [vmem:[#allocation8 + $0xb8] sm:$0xff]
    %v194 = vld [vmem:[#allocation8 + $0xc0] sm:$0xff]
    %v195 = vld [vmem:[#allocation8 + $0xc8] sm:$0xff]
    %v196 = vld [vmem:[#allocation8 + $0xd0] sm:$0xff]
    %v197 = vld [vmem:[#allocation8 + $0xd8] sm:$0xff]
    %v198 = vld [vmem:[#allocation8 + $0xe0] sm:$0xff]
    %v199 = vld [vmem:[#allocation8 + $0xe8] sm:$0xff]
    %v200 = vld [vmem:[#allocation8 + $0xf0] sm:$0xff]
    %v201 = vld [vmem:[#allocation8 + $0xf8] sm:$0xff]
    %v202 = vld [vmem:[#allocation8 + $0x100] sm:$0xff]
    %v203 = vld [vmem:[#allocation8 + $0x108] sm:$0xff]
    %v204 = vld [vmem:[#allocation8 + $0x110] sm:$0xff]
    %v205 = vld [vmem:[#allocation8 + $0x118] sm:$0xff]
    %v206 = vld [vmem:[#allocation8 + $0x120] sm:$0xff]
    %v207 = vld [vmem:[#allocation8 + $0x128] sm:$0xff]
    %v208 = vld [vmem:[#allocation8 + $0x130] sm:$0xff]
    %v209 = vld [vmem:[#allocation8 + $0x138] sm:$0xff]
    %v210 = vld [vmem:[#allocation8 + $0x140] sm:$0xff]
    %v211 = vld [vmem:[#allocation8 + $0x148] sm:$0xff]
    %v212 = vld [vmem:[#allocation8 + $0x150] sm:$0xff]
    %v213 = vld [vmem:[#allocation8 + $0x158] sm:$0xff]
    %v214 = vld [vmem:[#allocation8 + $0x160] sm:$0xff]
    %v215 = vld [vmem:[#allocation8 + $0x168] sm:$0xff]
    %v216 = vld [vmem:[#allocation8 + $0x170] sm:$0xff]
    %v217 = vld [vmem:[#allocation8 + $0x178] sm:$0xff]
    %v218 = vld [vmem:[#allocation8 + $0x180] sm:$0xff]
    %v219 = vld [vmem:[#allocation8 + $0x188] sm:$0xff]
    %v220 = vld [vmem:[#allocation8 + $0x190] sm:$0xff]
    %v221 = vld [vmem:[#allocation8 + $0x198] sm:$0xff]
    %v222 = vld [vmem:[#allocation8 + $0x1a0] sm:$0xff]
    %v223 = vld [vmem:[#allocation8 + $0x1a8] sm:$0xff]
    %v224 = vld [vmem:[#allocation8 + $0x1b0] sm:$0xff]
    %v225 = vld [vmem:[#allocation8 + $0x1b8] sm:$0xff]
    %v226 = vld [vmem:[#allocation8 + $0x1c0] sm:$0xff]
    %v227 = vld [vmem:[#allocation8 + $0x1c8] sm:$0xff]
    %v228 = vld [vmem:[#allocation8 + $0x1d0] sm:$0xff]
    %v229 = vld [vmem:[#allocation8 + $0x1d8] sm:$0xff]
    %v230 = vld [vmem:[#allocation8 + $0x1e0] sm:$0xff]
    %v231 = vld [vmem:[#allocation8 + $0x1e8] sm:$0xff]
    %v232 = vld [vmem:[#allocation8 + $0x1f0] sm:$0xff]
    %v233 = vld [vmem:[#allocation8 + $0x1f8] sm:$0xff]
    %v234 = vld [vmem:[#allocation8 + $0x200] sm:$0xff]
    %v235 = vld [vmem:[#allocation8 + $0x208] sm:$0xff]
    %v236 = vld [vmem:[#allocation8 + $0x210] sm:$0xff]
    %v237 = vld [vmem:[#allocation8 + $0x218] sm:$0xff]
    %v238 = vld [vmem:[#allocation8 + $0x220] sm:$0xff]
    %v239 = vld [vmem:[#allocation8 + $0x228] sm:$0xff]
    %v240 = vld [vmem:[#allocation8 + $0x230] sm:$0xff]
    %v241 = vld [vmem:[#allocation8 + $0x238] sm:$0xff]
    %v242 = vld [vmem:[#allocation8 + $0x240] sm:$0xff]
    %v243 = vld [vmem:[#allocation8 + $0x248] sm:$0xff]
    %v244 = vld [vmem:[#allocation8 + $0x250] sm:$0xff]
    %v245 = vld [vmem:[#allocation8 + $0x258] sm:$0xff]
    %v246 = vld [vmem:[#allocation8 + $0x260] sm:$0xff]
    %v247 = vld [vmem:[#allocation8 + $0x268] sm:$0xff]
    %v248 = vld [vmem:[#allocation8 + $0x270] sm:$0xff]
    %v249 = vld [vmem:[#allocation8 + $0x278] sm:$0xff]
    %v250 = vld [vmem:[#allocation8 + $0x280] sm:$0xff]
    %v251 = vld [vmem:[#allocation8 + $0x288] sm:$0xff]
    %v252 = vld [vmem:[#allocation8 + $0x290] sm:$0xff]
    %v253 = vld [vmem:[#allocation8 + $0x298] sm:$0xff]
    %v254 = vld [vmem:[#allocation8 + $0x2a0] sm:$0xff]
    %v255 = vld [vmem:[#allocation8 + $0x2a8] sm:$0xff]
    %v256 = vld [vmem:[#allocation8 + $0x2b0] sm:$0xff]
    %v257 = vld [vmem:[#allocation8 + $0x2b8] sm:$0xff]
    %v258 = vld [vmem:[#allocation8 + $0x2c0] sm:$0xff]
    %v259 = vld [vmem:[#allocation8 + $0x2c8] sm:$0xff]
    %v260 = vld [vmem:[#allocation8 + $0x2d0] sm:$0xff]
    %v261 = vld [vmem:[#allocation8 + $0x2d8] sm:$0xff]
    %v262 = vld [vmem:[#allocation8 + $0x2e0] sm:$0xff]
    %v263 = vld [vmem:[#allocation8 + $0x2e8] sm:$0xff]
    %v264 = vld [vmem:[#allocation8 + $0x2f0] sm:$0xff]
    %v265 = vld [vmem:[#allocation8 + $0x2f8] sm:$0xff]
    %v266 = vunpack.c.0.s8 %v170
    %v267 = vunpack.c.0.s8 %v171
    %v268 = vunpack.c.0.s8 %v172
    %v269 = vunpack.c.0.s8 %v173
    %v270 = vunpack.c.1.s8 %v170
    %v271 = vunpack.c.1.s8 %v171
    %v272 = vunpack.c.1.s8 %v172
    %v273 = vunpack.c.1.s8 %v173
    %v274 = vunpack.c.2.s8 %v170
    %v275 = vunpack.c.2.s8 %v171
    %v276 = vunpack.c.2.s8 %v172
    %v277 = vunpack.c.2.s8 %v173
    %v278 = vunpack.c.3.s8 %v170
    %v279 = vunpack.c.3.s8 %v171
    %v280 = vunpack.c.3.s8 %v172
    %v281 = vunpack.c.3.s8 %v173
    %v282 = vunpack.c.0.s8 %v174
    %v283 = vunpack.c.0.s8 %v175
    %v284 = vunpack.c.0.s8 %v176
    %v285 = vunpack.c.0.s8 %v177
    %v286 = vunpack.c.1.s8 %v174
    %v287 = vunpack.c.1.s8 %v175
    %v288 = vunpack.c.1.s8 %v176
    %v289 = vunpack.c.1.s8 %v177
    %v290 = vunpack.c.2.s8 %v174
    %v291 = vunpack.c.2.s8 %v175
    %v292 = vunpack.c.2.s8 %v176
    %v293 = vunpack.c.2.s8 %v177
    %v294 = vunpack.c.3.s8 %v174
    %v295 = vunpack.c.3.s8 %v175
    %v296 = vunpack.c.3.s8 %v176
    %v297 = vunpack.c.3.s8 %v177
    %v298 = vunpack.c.0.s8 %v178
    %v299 = vunpack.c.0.s8 %v179
    %v300 = vunpack.c.0.s8 %v180
    %v301 = vunpack.c.0.s8 %v181
    %v302 = vunpack.c.1.s8 %v178
    %v303 = vunpack.c.1.s8 %v179
    %v304 = vunpack.c.1.s8 %v180
    %v305 = vunpack.c.1.s8 %v181
    %v306 = vunpack.c.2.s8 %v178
    %v307 = vunpack.c.2.s8 %v179
    %v308 = vunpack.c.2.s8 %v180
    %v309 = vunpack.c.2.s8 %v181
    %v310 = vunpack.c.3.s8 %v178
    %v311 = vunpack.c.3.s8 %v179
    %v312 = vunpack.c.3.s8 %v180
    %v313 = vunpack.c.3.s8 %v181
    %v314 = vunpack.c.0.s8 %v182
    %v315 = vunpack.c.0.s8 %v183
    %v316 = vunpack.c.0.s8 %v184
    %v317 = vunpack.c.0.s8 %v185
    %v318 = vunpack.c.1.s8 %v182
    %v319 = vunpack.c.1.s8 %v183
    %v320 = vunpack.c.1.s8 %v184
    %v321 = vunpack.c.1.s8 %v185
    %v322 = vunpack.c.2.s8 %v182
    %v323 = vunpack.c.2.s8 %v183
    %v324 = vunpack.c.2.s8 %v184
    %v325 = vunpack.c.2.s8 %v185
    %v326 = vunpack.c.3.s8 %v182
    %v327 = vunpack.c.3.s8 %v183
    %v328 = vunpack.c.3.s8 %v184
    %v329 = vunpack.c.3.s8 %v185
    %v330 = vunpack.c.0.s8 %v186
    %v331 = vunpack.c.0.s8 %v187
    %v332 = vunpack.c.0.s8 %v188
    %v333 = vunpack.c.0.s8 %v189
    %v334 = vunpack.c.1.s8 %v186
    %v335 = vunpack.c.1.s8 %v187
    %v336 = vunpack.c.1.s8 %v188
    %v337 = vunpack.c.1.s8 %v189
    %v338 = vunpack.c.2.s8 %v186
    %v339 = vunpack.c.2.s8 %v187
    %v340 = vunpack.c.2.s8 %v188
    %v341 = vunpack.c.2.s8 %v189
    %v342 = vunpack.c.3.s8 %v186
    %v343 = vunpack.c.3.s8 %v187
    %v344 = vunpack.c.3.s8 %v188
    %v345 = vunpack.c.3.s8 %v189
    %v346 = vunpack.c.0.s8 %v190
    %v347 = vunpack.c.0.s8 %v191
    %v348 = vunpack.c.0.s8 %v192
    %v349 = vunpack.c.0.s8 %v193
    %v350 = vunpack.c.1.s8 %v190
    %v351 = vunpack.c.1.s8 %v191
    %v352 = vunpack.c.1.s8 %v192
    %v353 = vunpack.c.1.s8 %v193
    %v354 = vunpack.c.2.s8 %v190
    %v355 = vunpack.c.2.s8 %v191
    %v356 = vunpack.c.2.s8 %v192
    %v357 = vunpack.c.2.s8 %v193
    %v358 = vunpack.c.3.s8 %v190
    %v359 = vunpack.c.3.s8 %v191
    %v360 = vunpack.c.3.s8 %v192
    %v361 = vunpack.c.3.s8 %v193
    %v362 = vunpack.c.0.s8 %v194
    %v363 = vunpack.c.0.s8 %v195
    %v364 = vunpack.c.0.s8 %v196
    %v365 = vunpack.c.0.s8 %v197
    %v366 = vunpack.c.1.s8 %v194
    %v367 = vunpack.c.1.s8 %v195
    %v368 = vunpack.c.1.s8 %v196
    %v369 = vunpack.c.1.s8 %v197
    %v370 = vunpack.c.2.s8 %v194
    %v371 = vunpack.c.2.s8 %v195
    %v372 = vunpack.c.2.s8 %v196
    %v373 = vunpack.c.2.s8 %v197
    %v374 = vunpack.c.3.s8 %v194
    %v375 = vunpack.c.3.s8 %v195
    %v376 = vunpack.c.3.s8 %v196
    %v377 = vunpack.c.3.s8 %v197
    %v378 = vunpack.c.0.s8 %v198
    %v379 = vunpack.c.0.s8 %v199
    %v380 = vunpack.c.0.s8 %v200
    %v381 = vunpack.c.0.s8 %v201
    %v382 = vunpack.c.1.s8 %v198
    %v383 = vunpack.c.1.s8 %v199
    %v384 = vunpack.c.1.s8 %v200
    %v385 = vunpack.c.1.s8 %v201
    %v386 = vunpack.c.2.s8 %v198
    %v387 = vunpack.c.2.s8 %v199
    %v388 = vunpack.c.2.s8 %v200
    %v389 = vunpack.c.2.s8 %v201
    %v390 = vunpack.c.3.s8 %v198
    %v391 = vunpack.c.3.s8 %v199
    %v392 = vunpack.c.3.s8 %v200
    %v393 = vunpack.c.3.s8 %v201
    %v394 = vunpack.c.0.s8 %v202
    %v395 = vunpack.c.0.s8 %v203
    %v396 = vunpack.c.0.s8 %v204
    %v397 = vunpack.c.0.s8 %v205
    %v398 = vunpack.c.1.s8 %v202
    %v399 = vunpack.c.1.s8 %v203
    %v400 = vunpack.c.1.s8 %v204
    %v401 = vunpack.c.1.s8 %v205
    %v402 = vunpack.c.2.s8 %v202
    %v403 = vunpack.c.2.s8 %v203
    %v404 = vunpack.c.2.s8 %v204
    %v405 = vunpack.c.2.s8 %v205
    %v406 = vunpack.c.3.s8 %v202
    %v407 = vunpack.c.3.s8 %v203
    %v408 = vunpack.c.3.s8 %v204
    %v409 = vunpack.c.3.s8 %v205
    %v410 = vunpack.c.0.s8 %v206
    %v411 = vunpack.c.0.s8 %v207
    %v412 = vunpack.c.0.s8 %v208
    %v413 = vunpack.c.0.s8 %v209
    %v414 = vunpack.c.1.s8 %v206
    %v415 = vunpack.c.1.s8 %v207
    %v416 = vunpack.c.1.s8 %v208
    %v417 = vunpack.c.1.s8 %v209
    %v418 = vunpack.c.2.s8 %v206
    %v419 = vunpack.c.2.s8 %v207
    %v420 = vunpack.c.2.s8 %v208
    %v421 = vunpack.c.2.s8 %v209
    %v422 = vunpack.c.3.s8 %v206
    %v423 = vunpack.c.3.s8 %v207
    %v424 = vunpack.c.3.s8 %v208
    %v425 = vunpack.c.3.s8 %v209
    %v426 = vunpack.c.0.s8 %v210
    %v427 = vunpack.c.0.s8 %v211
    %v428 = vunpack.c.0.s8 %v212
    %v429 = vunpack.c.0.s8 %v213
    %v430 = vunpack.c.1.s8 %v210
    %v431 = vunpack.c.1.s8 %v211
    %v432 = vunpack.c.1.s8 %v212
    %v433 = vunpack.c.1.s8 %v213
    %v434 = vunpack.c.2.s8 %v210
    %v435 = vunpack.c.2.s8 %v211
    %v436 = vunpack.c.2.s8 %v212
    %v437 = vunpack.c.2.s8 %v213
    %v438 = vunpack.c.3.s8 %v210
    %v439 = vunpack.c.3.s8 %v211
    %v440 = vunpack.c.3.s8 %v212
    %v441 = vunpack.c.3.s8 %v213
    %v442 = vunpack.c.0.s8 %v214
    %v443 = vunpack.c.0.s8 %v215
    %v444 = vunpack.c.0.s8 %v216
    %v445 = vunpack.c.0.s8 %v217
    %v446 = vunpack.c.1.s8 %v214
    %v447 = vunpack.c.1.s8 %v215
    %v448 = vunpack.c.1.s8 %v216
    %v449 = vunpack.c.1.s8 %v217
    %v450 = vunpack.c.2.s8 %v214
    %v451 = vunpack.c.2.s8 %v215
    %v452 = vunpack.c.2.s8 %v216
    %v453 = vunpack.c.2.s8 %v217
    %v454 = vunpack.c.3.s8 %v214
    %v455 = vunpack.c.3.s8 %v215
    %v456 = vunpack.c.3.s8 %v216
    %v457 = vunpack.c.3.s8 %v217
    %v458 = vunpack.c.0.s8 %v218
    %v459 = vunpack.c.0.s8 %v219
    %v460 = vunpack.c.0.s8 %v220
    %v461 = vunpack.c.0.s8 %v221
    %v462 = vunpack.c.1.s8 %v218
    %v463 = vunpack.c.1.s8 %v219
    %v464 = vunpack.c.1.s8 %v220
    %v465 = vunpack.c.1.s8 %v221
    %v466 = vunpack.c.2.s8 %v218
    %v467 = vunpack.c.2.s8 %v219
    %v468 = vunpack.c.2.s8 %v220
    %v469 = vunpack.c.2.s8 %v221
    %v470 = vunpack.c.3.s8 %v218
    %v471 = vunpack.c.3.s8 %v219
    %v472 = vunpack.c.3.s8 %v220
    %v473 = vunpack.c.3.s8 %v221
    %v474 = vunpack.c.0.s8 %v222
    %v475 = vunpack.c.0.s8 %v223
    %v476 = vunpack.c.0.s8 %v224
    %v477 = vunpack.c.0.s8 %v225
    %v478 = vunpack.c.1.s8 %v222
    %v479 = vunpack.c.1.s8 %v223
    %v480 = vunpack.c.1.s8 %v224
    %v481 = vunpack.c.1.s8 %v225
    %v482 = vunpack.c.2.s8 %v222
    %v483 = vunpack.c.2.s8 %v223
    %v484 = vunpack.c.2.s8 %v224
    %v485 = vunpack.c.2.s8 %v225
    %v486 = vunpack.c.3.s8 %v222
    %v487 = vunpack.c.3.s8 %v223
    %v488 = vunpack.c.3.s8 %v224
    %v489 = vunpack.c.3.s8 %v225
    %v490 = vunpack.c.0.s8 %v226
    %v491 = vunpack.c.0.s8 %v227
    %v492 = vunpack.c.0.s8 %v228
    %v493 = vunpack.c.0.s8 %v229
    %v494 = vunpack.c.1.s8 %v226
    %v495 = vunpack.c.1.s8 %v227
    %v496 = vunpack.c.1.s8 %v228
    %v497 = vunpack.c.1.s8 %v229
    %v498 = vunpack.c.2.s8 %v226
    %v499 = vunpack.c.2.s8 %v227
    %v500 = vunpack.c.2.s8 %v228
    %v501 = vunpack.c.2.s8 %v229
    %v502 = vunpack.c.3.s8 %v226
    %v503 = vunpack.c.3.s8 %v227
    %v504 = vunpack.c.3.s8 %v228
    %v505 = vunpack.c.3.s8 %v229
    %v506 = vunpack.c.0.s8 %v230
    %v507 = vunpack.c.0.s8 %v231
    %v508 = vunpack.c.0.s8 %v232
    %v509 = vunpack.c.0.s8 %v233
    %v510 = vunpack.c.1.s8 %v230
    %v511 = vunpack.c.1.s8 %v231
    %v512 = vunpack.c.1.s8 %v232
    %v513 = vunpack.c.1.s8 %v233
    %v514 = vunpack.c.2.s8 %v230
    %v515 = vunpack.c.2.s8 %v231
    %v516 = vunpack.c.2.s8 %v232
    %v517 = vunpack.c.2.s8 %v233
    %v518 = vunpack.c.3.s8 %v230
    %v519 = vunpack.c.3.s8 %v231
    %v520 = vunpack.c.3.s8 %v232
    %v521 = vunpack.c.3.s8 %v233
    %v522 = vunpack.c.0.s8 %v234
    %v523 = vunpack.c.0.s8 %v235
    %v524 = vunpack.c.0.s8 %v236
    %v525 = vunpack.c.0.s8 %v237
    %v526 = vunpack.c.1.s8 %v234
    %v527 = vunpack.c.1.s8 %v235
    %v528 = vunpack.c.1.s8 %v236
    %v529 = vunpack.c.1.s8 %v237
    %v530 = vunpack.c.2.s8 %v234
    %v531 = vunpack.c.2.s8 %v235
    %v532 = vunpack.c.2.s8 %v236
    %v533 = vunpack.c.2.s8 %v237
    %v534 = vunpack.c.3.s8 %v234
    %v535 = vunpack.c.3.s8 %v235
    %v536 = vunpack.c.3.s8 %v236
    %v537 = vunpack.c.3.s8 %v237
    %v538 = vunpack.c.0.s8 %v238
    %v539 = vunpack.c.0.s8 %v239
    %v540 = vunpack.c.0.s8 %v240
    %v541 = vunpack.c.0.s8 %v241
    %v542 = vunpack.c.1.s8 %v238
    %v543 = vunpack.c.1.s8 %v239
    %v544 = vunpack.c.1.s8 %v240
    %v545 = vunpack.c.1.s8 %v241
    %v546 = vunpack.c.2.s8 %v238
    %v547 = vunpack.c.2.s8 %v239
    %v548 = vunpack.c.2.s8 %v240
    %v549 = vunpack.c.2.s8 %v241
    %v550 = vunpack.c.3.s8 %v238
    %v551 = vunpack.c.3.s8 %v239
    %v552 = vunpack.c.3.s8 %v240
    %v553 = vunpack.c.3.s8 %v241
    %v554 = vunpack.c.0.s8 %v242
    %v555 = vunpack.c.0.s8 %v243
    %v556 = vunpack.c.0.s8 %v244
    %v557 = vunpack.c.0.s8 %v245
    %v558 = vunpack.c.1.s8 %v242
    %v559 = vunpack.c.1.s8 %v243
    %v560 = vunpack.c.1.s8 %v244
    %v561 = vunpack.c.1.s8 %v245
    %v562 = vunpack.c.2.s8 %v242
    %v563 = vunpack.c.2.s8 %v243
    %v564 = vunpack.c.2.s8 %v244
    %v565 = vunpack.c.2.s8 %v245
    %v566 = vunpack.c.3.s8 %v242
    %v567 = vunpack.c.3.s8 %v243
    %v568 = vunpack.c.3.s8 %v244
    %v569 = vunpack.c.3.s8 %v245
    %v570 = vunpack.c.0.s8 %v246
    %v571 = vunpack.c.0.s8 %v247
    %v572 = vunpack.c.0.s8 %v248
    %v573 = vunpack.c.0.s8 %v249
    %v574 = vunpack.c.1.s8 %v246
    %v575 = vunpack.c.1.s8 %v247
    %v576 = vunpack.c.1.s8 %v248
    %v577 = vunpack.c.1.s8 %v249
    %v578 = vunpack.c.2.s8 %v246
    %v579 = vunpack.c.2.s8 %v247
    %v580 = vunpack.c.2.s8 %v248
    %v581 = vunpack.c.2.s8 %v249
    %v582 = vunpack.c.3.s8 %v246
    %v583 = vunpack.c.3.s8 %v247
    %v584 = vunpack.c.3.s8 %v248
    %v585 = vunpack.c.3.s8 %v249
    %v586 = vunpack.c.0.s8 %v250
    %v587 = vunpack.c.0.s8 %v251
    %v588 = vunpack.c.0.s8 %v252
    %v589 = vunpack.c.0.s8 %v253
    %v590 = vunpack.c.1.s8 %v250
    %v591 = vunpack.c.1.s8 %v251
    %v592 = vunpack.c.1.s8 %v252
    %v593 = vunpack.c.1.s8 %v253
    %v594 = vunpack.c.2.s8 %v250
    %v595 = vunpack.c.2.s8 %v251
    %v596 = vunpack.c.2.s8 %v252
    %v597 = vunpack.c.2.s8 %v253
    %v598 = vunpack.c.3.s8 %v250
    %v599 = vunpack.c.3.s8 %v251
    %v600 = vunpack.c.3.s8 %v252
    %v601 = vunpack.c.3.s8 %v253
    %v602 = vunpack.c.0.s8 %v254
    %v603 = vunpack.c.0.s8 %v255
    %v604 = vunpack.c.0.s8 %v256
    %v605 = vunpack.c.0.s8 %v257
    %v606 = vunpack.c.1.s8 %v254
    %v607 = vunpack.c.1.s8 %v255
    %v608 = vunpack.c.1.s8 %v256
    %v609 = vunpack.c.1.s8 %v257
    %v610 = vunpack.c.2.s8 %v254
    %v611 = vunpack.c.2.s8 %v255
    %v612 = vunpack.c.2.s8 %v256
    %v613 = vunpack.c.2.s8 %v257
    %v614 = vunpack.c.3.s8 %v254
    %v615 = vunpack.c.3.s8 %v255
    %v616 = vunpack.c.3.s8 %v256
    %v617 = vunpack.c.3.s8 %v257
    %v618 = vunpack.c.0.s8 %v258
    %v619 = vunpack.c.0.s8 %v259
    %v620 = vunpack.c.0.s8 %v260
    %v621 = vunpack.c.0.s8 %v261
    %v622 = vunpack.c.1.s8 %v258
    %v623 = vunpack.c.1.s8 %v259
    %v624 = vunpack.c.1.s8 %v260
    %v625 = vunpack.c.1.s8 %v261
    %v626 = vunpack.c.2.s8 %v258
    %v627 = vunpack.c.2.s8 %v259
    %v628 = vunpack.c.2.s8 %v260
    %v629 = vunpack.c.2.s8 %v261
    %v630 = vunpack.c.3.s8 %v258
    %v631 = vunpack.c.3.s8 %v259
    %v632 = vunpack.c.3.s8 %v260
    %v633 = vunpack.c.3.s8 %v261
    %v634 = vunpack.c.0.s8 %v262
    %v635 = vunpack.c.0.s8 %v263
    %v636 = vunpack.c.0.s8 %v264
    %v637 = vunpack.c.0.s8 %v265
    %v638 = vunpack.c.1.s8 %v262
    %v639 = vunpack.c.1.s8 %v263
    %v640 = vunpack.c.1.s8 %v264
    %v641 = vunpack.c.1.s8 %v265
    %v642 = vunpack.c.2.s8 %v262
    %v643 = vunpack.c.2.s8 %v263
    %v644 = vunpack.c.2.s8 %v264
    %v645 = vunpack.c.2.s8 %v265
    %v646 = vunpack.c.3.s8 %v262
    %v647 = vunpack.c.3.s8 %v263
    %v648 = vunpack.c.3.s8 %v264
    %v649 = vunpack.c.3.s8 %v265
    %v650 = vcvt.s32.f32 %v266
    %v651 = vcvt.s32.f32 %v267
    %v652 = vcvt.s32.f32 %v268
    %v653 = vcvt.s32.f32 %v269
    %v654 = vcvt.s32.f32 %v270
    %v655 = vcvt.s32.f32 %v271
    %v656 = vcvt.s32.f32 %v272
    %v657 = vcvt.s32.f32 %v273
    %v658 = vcvt.s32.f32 %v274
    %v659 = vcvt.s32.f32 %v275
    %v660 = vcvt.s32.f32 %v276
    %v661 = vcvt.s32.f32 %v277
    %v662 = vcvt.s32.f32 %v278
    %v663 = vcvt.s32.f32 %v279
    %v664 = vcvt.s32.f32 %v280
    %v665 = vcvt.s32.f32 %v281
    %v666 = vcvt.s32.f32 %v282
    %v667 = vcvt.s32.f32 %v283
    %v668 = vcvt.s32.f32 %v284
    %v669 = vcvt.s32.f32 %v285
    %v670 = vcvt.s32.f32 %v286
    %v671 = vcvt.s32.f32 %v287
    %v672 = vcvt.s32.f32 %v288
    %v673 = vcvt.s32.f32 %v289
    %v674 = vcvt.s32.f32 %v290
    %v675 = vcvt.s32.f32 %v291
    %v676 = vcvt.s32.f32 %v292
    %v677 = vcvt.s32.f32 %v293
    %v678 = vcvt.s32.f32 %v294
    %v679 = vcvt.s32.f32 %v295
    %v680 = vcvt.s32.f32 %v296
    %v681 = vcvt.s32.f32 %v297
    %v682 = vcvt.s32.f32 %v298
    %v683 = vcvt.s32.f32 %v299
    %v684 = vcvt.s32.f32 %v300
    %v685 = vcvt.s32.f32 %v301
    %v686 = vcvt.s32.f32 %v302
    %v687 = vcvt.s32.f32 %v303
    %v688 = vcvt.s32.f32 %v304
    %v689 = vcvt.s32.f32 %v305
    %v690 = vcvt.s32.f32 %v306
    %v691 = vcvt.s32.f32 %v307
    %v692 = vcvt.s32.f32 %v308
    %v693 = vcvt.s32.f32 %v309
    %v694 = vcvt.s32.f32 %v310
    %v695 = vcvt.s32.f32 %v311
    %v696 = vcvt.s32.f32 %v312
    %v697 = vcvt.s32.f32 %v313
    %v698 = vcvt.s32.f32 %v314
    %v699 = vcvt.s32.f32 %v315
    %v700 = vcvt.s32.f32 %v316
    %v701 = vcvt.s32.f32 %v317
    %v702 = vcvt.s32.f32 %v318
    %v703 = vcvt.s32.f32 %v319
    %v704 = vcvt.s32.f32 %v320
    %v705 = vcvt.s32.f32 %v321
    %v706 = vcvt.s32.f32 %v322
    %v707 = vcvt.s32.f32 %v323
    %v708 = vcvt.s32.f32 %v324
    %v709 = vcvt.s32.f32 %v325
    %v710 = vcvt.s32.f32 %v326
    %v711 = vcvt.s32.f32 %v327
    %v712 = vcvt.s32.f32 %v328
    %v713 = vcvt.s32.f32 %v329
    %v714 = vcvt.s32.f32 %v330
    %v715 = vcvt.s32.f32 %v331
    %v716 = vcvt.s32.f32 %v332
    %v717 = vcvt.s32.f32 %v333
    %v718 = vcvt.s32.f32 %v334
    %v719 = vcvt.s32.f32 %v335
    %v720 = vcvt.s32.f32 %v336
    %v721 = vcvt.s32.f32 %v337
    %v722 = vcvt.s32.f32 %v338
    %v723 = vcvt.s32.f32 %v339
    %v724 = vcvt.s32.f32 %v340
    %v725 = vcvt.s32.f32 %v341
    %v726 = vcvt.s32.f32 %v342
    %v727 = vcvt.s32.f32 %v343
    %v728 = vcvt.s32.f32 %v344
    %v729 = vcvt.s32.f32 %v345
    %v730 = vcvt.s32.f32 %v346
    %v731 = vcvt.s32.f32 %v347
    %v732 = vcvt.s32.f32 %v348
    %v733 = vcvt.s32.f32 %v349
    %v734 = vcvt.s32.f32 %v350
    %v735 = vcvt.s32.f32 %v351
    %v736 = vcvt.s32.f32 %v352
    %v737 = vcvt.s32.f32 %v353
    %v738 = vcvt.s32.f32 %v354
    %v739 = vcvt.s32.f32 %v355
    %v740 = vcvt.s32.f32 %v356
    %v741 = vcvt.s32.f32 %v357
    %v742 = vcvt.s32.f32 %v358
    %v743 = vcvt.s32.f32 %v359
    %v744 = vcvt.s32.f32 %v360
    %v745 = vcvt.s32.f32 %v361
    %v746 = vcvt.s32.f32 %v362
    %v747 = vcvt.s32.f32 %v363
    %v748 = vcvt.s32.f32 %v364
    %v749 = vcvt.s32.f32 %v365
    %v750 = vcvt.s32.f32 %v366
    %v751 = vcvt.s32.f32 %v367
    %v752 = vcvt.s32.f32 %v368
    %v753 = vcvt.s32.f32 %v369
    %v754 = vcvt.s32.f32 %v370
    %v755 = vcvt.s32.f32 %v371
    %v756 = vcvt.s32.f32 %v372
    %v757 = vcvt.s32.f32 %v373
    %v758 = vcvt.s32.f32 %v374
    %v759 = vcvt.s32.f32 %v375
    %v760 = vcvt.s32.f32 %v376
    %v761 = vcvt.s32.f32 %v377
    %v762 = vcvt.s32.f32 %v378
    %v763 = vcvt.s32.f32 %v379
    %v764 = vcvt.s32.f32 %v380
    %v765 = vcvt.s32.f32 %v381
    %v766 = vcvt.s32.f32 %v382
    %v767 = vcvt.s32.f32 %v383
    %v768 = vcvt.s32.f32 %v384
    %v769 = vcvt.s32.f32 %v385
    %v770 = vcvt.s32.f32 %v386
    %v771 = vcvt.s32.f32 %v387
    %v772 = vcvt.s32.f32 %v388
    %v773 = vcvt.s32.f32 %v389
    %v774 = vcvt.s32.f32 %v390
    %v775 = vcvt.s32.f32 %v391
    %v776 = vcvt.s32.f32 %v392
    %v777 = vcvt.s32.f32 %v393
    %v778 = vcvt.s32.f32 %v394
    %v779 = vcvt.s32.f32 %v395
    %v780 = vcvt.s32.f32 %v396
    %v781 = vcvt.s32.f32 %v397
    %v782 = vcvt.s32.f32 %v398
    %v783 = vcvt.s32.f32 %v399
    %v784 = vcvt.s32.f32 %v400
    %v785 = vcvt.s32.f32 %v401
    %v786 = vcvt.s32.f32 %v402
    %v787 = vcvt.s32.f32 %v403
    %v788 = vcvt.s32.f32 %v404
    %v789 = vcvt.s32.f32 %v405
    %v790 = vcvt.s32.f32 %v406
    %v791 = vcvt.s32.f32 %v407
    %v792 = vcvt.s32.f32 %v408
    %v793 = vcvt.s32.f32 %v409
    %v794 = vcvt.s32.f32 %v410
    %v795 = vcvt.s32.f32 %v411
    %v796 = vcvt.s32.f32 %v412
    %v797 = vcvt.s32.f32 %v413
    %v798 = vcvt.s32.f32 %v414
    %v799 = vcvt.s32.f32 %v415
    %v800 = vcvt.s32.f32 %v416
    %v801 = vcvt.s32.f32 %v417
    %v802 = vcvt.s32.f32 %v418
    %v803 = vcvt.s32.f32 %v419
    %v804 = vcvt.s32.f32 %v420
    %v805 = vcvt.s32.f32 %v421
    %v806 = vcvt.s32.f32 %v422
    %v807 = vcvt.s32.f32 %v423
    %v808 = vcvt.s32.f32 %v424
    %v809 = vcvt.s32.f32 %v425
    %v810 = vcvt.s32.f32 %v426
    %v811 = vcvt.s32.f32 %v427
    %v812 = vcvt.s32.f32 %v428
    %v813 = vcvt.s32.f32 %v429
    %v814 = vcvt.s32.f32 %v430
    %v815 = vcvt.s32.f32 %v431
    %v816 = vcvt.s32.f32 %v432
    %v817 = vcvt.s32.f32 %v433
    %v818 = vcvt.s32.f32 %v434
    %v819 = vcvt.s32.f32 %v435
    %v820 = vcvt.s32.f32 %v436
    %v821 = vcvt.s32.f32 %v437
    %v822 = vcvt.s32.f32 %v438
    %v823 = vcvt.s32.f32 %v439
    %v824 = vcvt.s32.f32 %v440
    %v825 = vcvt.s32.f32 %v441
    %v826 = vcvt.s32.f32 %v442
    %v827 = vcvt.s32.f32 %v443
    %v828 = vcvt.s32.f32 %v444
    %v829 = vcvt.s32.f32 %v445
    %v830 = vcvt.s32.f32 %v446
    %v831 = vcvt.s32.f32 %v447
    %v832 = vcvt.s32.f32 %v448
    %v833 = vcvt.s32.f32 %v449
    %v834 = vcvt.s32.f32 %v450
    %v835 = vcvt.s32.f32 %v451
    %v836 = vcvt.s32.f32 %v452
    %v837 = vcvt.s32.f32 %v453
    %v838 = vcvt.s32.f32 %v454
    %v839 = vcvt.s32.f32 %v455
    %v840 = vcvt.s32.f32 %v456
    %v841 = vcvt.s32.f32 %v457
    %v842 = vcvt.s32.f32 %v458
    %v843 = vcvt.s32.f32 %v459
    %v844 = vcvt.s32.f32 %v460
    %v845 = vcvt.s32.f32 %v461
    %v846 = vcvt.s32.f32 %v462
    %v847 = vcvt.s32.f32 %v463
    %v848 = vcvt.s32.f32 %v464
    %v849 = vcvt.s32.f32 %v465
    %v850 = vcvt.s32.f32 %v466
    %v851 = vcvt.s32.f32 %v467
    %v852 = vcvt.s32.f32 %v468
    %v853 = vcvt.s32.f32 %v469
    %v854 = vcvt.s32.f32 %v470
    %v855 = vcvt.s32.f32 %v471
    %v856 = vcvt.s32.f32 %v472
    %v857 = vcvt.s32.f32 %v473
    %v858 = vcvt.s32.f32 %v474
    %v859 = vcvt.s32.f32 %v475
    %v860 = vcvt.s32.f32 %v476
    %v861 = vcvt.s32.f32 %v477
    %v862 = vcvt.s32.f32 %v478
    %v863 = vcvt.s32.f32 %v479
    %v864 = vcvt.s32.f32 %v480
    %v865 = vcvt.s32.f32 %v481
    %v866 = vcvt.s32.f32 %v482
    %v867 = vcvt.s32.f32 %v483
    %v868 = vcvt.s32.f32 %v484
    %v869 = vcvt.s32.f32 %v485
    %v870 = vcvt.s32.f32 %v486
    %v871 = vcvt.s32.f32 %v487
    %v872 = vcvt.s32.f32 %v488
    %v873 = vcvt.s32.f32 %v489
    %v874 = vcvt.s32.f32 %v490
    %v875 = vcvt.s32.f32 %v491
    %v876 = vcvt.s32.f32 %v492
    %v877 = vcvt.s32.f32 %v493
    %v878 = vcvt.s32.f32 %v494
    %v879 = vcvt.s32.f32 %v495
    %v880 = vcvt.s32.f32 %v496
    %v881 = vcvt.s32.f32 %v497
    %v882 = vcvt.s32.f32 %v498
    %v883 = vcvt.s32.f32 %v499
    %v884 = vcvt.s32.f32 %v500
    %v885 = vcvt.s32.f32 %v501
    %v886 = vcvt.s32.f32 %v502
    %v887 = vcvt.s32.f32 %v503
    %v888 = vcvt.s32.f32 %v504
    %v889 = vcvt.s32.f32 %v505
    %v890 = vcvt.s32.f32 %v506
    %v891 = vcvt.s32.f32 %v507
    %v892 = vcvt.s32.f32 %v508
    %v893 = vcvt.s32.f32 %v509
    %v894 = vcvt.s32.f32 %v510
    %v895 = vcvt.s32.f32 %v511
    %v896 = vcvt.s32.f32 %v512
    %v897 = vcvt.s32.f32 %v513
    %v898 = vcvt.s32.f32 %v514
    %v899 = vcvt.s32.f32 %v515
    %v900 = vcvt.s32.f32 %v516
    %v901 = vcvt.s32.f32 %v517
    %v902 = vcvt.s32.f32 %v518
    %v903 = vcvt.s32.f32 %v519
    %v904 = vcvt.s32.f32 %v520
    %v905 = vcvt.s32.f32 %v521
    %v906 = vcvt.s32.f32 %v522
    %v907 = vcvt.s32.f32 %v523
    %v908 = vcvt.s32.f32 %v524
    %v909 = vcvt.s32.f32 %v525
    %v910 = vcvt.s32.f32 %v526
    %v911 = vcvt.s32.f32 %v527
    %v912 = vcvt.s32.f32 %v528
    %v913 = vcvt.s32.f32 %v529
    %v914 = vcvt.s32.f32 %v530
    %v915 = vcvt.s32.f32 %v531
    %v916 = vcvt.s32.f32 %v532
    %v917 = vcvt.s32.f32 %v533
    %v918 = vcvt.s32.f32 %v534
    %v919 = vcvt.s32.f32 %v535
    %v920 = vcvt.s32.f32 %v536
    %v921 = vcvt.s32.f32 %v537
    %v922 = vcvt.s32.f32 %v538
    %v923 = vcvt.s32.f32 %v539
    %v924 = vcvt.s32.f32 %v540
    %v925 = vcvt.s32.f32 %v541
    %v926 = vcvt.s32.f32 %v542
    %v927 = vcvt.s32.f32 %v543
    %v928 = vcvt.s32.f32 %v544
    %v929 = vcvt.s32.f32 %v545
    %v930 = vcvt.s32.f32 %v546
    %v931 = vcvt.s32.f32 %v547
    %v932 = vcvt.s32.f32 %v548
    %v933 = vcvt.s32.f32 %v549
    %v934 = vcvt.s32.f32 %v550
    %v935 = vcvt.s32.f32 %v551
    %v936 = vcvt.s32.f32 %v552
    %v937 = vcvt.s32.f32 %v553
    %v938 = vcvt.s32.f32 %v554
    %v939 = vcvt.s32.f32 %v555
    %v940 = vcvt.s32.f32 %v556
    %v941 = vcvt.s32.f32 %v557
    %v942 = vcvt.s32.f32 %v558
    %v943 = vcvt.s32.f32 %v559
    %v944 = vcvt.s32.f32 %v560
    %v945 = vcvt.s32.f32 %v561
    %v946 = vcvt.s32.f32 %v562
    %v947 = vcvt.s32.f32 %v563
    %v948 = vcvt.s32.f32 %v564
    %v949 = vcvt.s32.f32 %v565
    %v950 = vcvt.s32.f32 %v566
    %v951 = vcvt.s32.f32 %v567
    %v952 = vcvt.s32.f32 %v568
    %v953 = vcvt.s32.f32 %v569
    %v954 = vcvt.s32.f32 %v570
    %v955 = vcvt.s32.f32 %v571
    %v956 = vcvt.s32.f32 %v572
    %v957 = vcvt.s32.f32 %v573
    %v958 = vcvt.s32.f32 %v574
    %v959 = vcvt.s32.f32 %v575
    %v960 = vcvt.s32.f32 %v576
    %v961 = vcvt.s32.f32 %v577
    %v962 = vcvt.s32.f32 %v578
    %v963 = vcvt.s32.f32 %v579
    %v964 = vcvt.s32.f32 %v580
    %v965 = vcvt.s32.f32 %v581
    %v966 = vcvt.s32.f32 %v582
    %v967 = vcvt.s32.f32 %v583
    %v968 = vcvt.s32.f32 %v584
    %v969 = vcvt.s32.f32 %v585
    %v970 = vcvt.s32.f32 %v586
    %v971 = vcvt.s32.f32 %v587
    %v972 = vcvt.s32.f32 %v588
    %v973 = vcvt.s32.f32 %v589
    %v974 = vcvt.s32.f32 %v590
    %v975 = vcvt.s32.f32 %v591
    %v976 = vcvt.s32.f32 %v592
    %v977 = vcvt.s32.f32 %v593
    %v978 = vcvt.s32.f32 %v594
    %v979 = vcvt.s32.f32 %v595
    %v980 = vcvt.s32.f32 %v596
    %v981 = vcvt.s32.f32 %v597
    %v982 = vcvt.s32.f32 %v598
    %v983 = vcvt.s32.f32 %v599
    %v984 = vcvt.s32.f32 %v600
    %v985 = vcvt.s32.f32 %v601
    %v986 = vcvt.s32.f32 %v602
    %v987 = vcvt.s32.f32 %v603
    %v988 = vcvt.s32.f32 %v604
    %v989 = vcvt.s32.f32 %v605
    %v990 = vcvt.s32.f32 %v606
    %v991 = vcvt.s32.f32 %v607
    %v992 = vcvt.s32.f32 %v608
    %v993 = vcvt.s32.f32 %v609
    %v994 = vcvt.s32.f32 %v610
    %v995 = vcvt.s32.f32 %v611
    %v996 = vcvt.s32.f32 %v612
    %v997 = vcvt.s32.f32 %v613
    %v998 = vcvt.s32.f32 %v614
    %v999 = vcvt.s32.f32 %v615
    %v1000 = vcvt.s32.f32 %v616
    %v1001 = vcvt.s32.f32 %v617
    %v1002 = vcvt.s32.f32 %v618
    %v1003 = vcvt.s32.f32 %v619
    %v1004 = vcvt.s32.f32 %v620
    %v1005 = vcvt.s32.f32 %v621
    %v1006 = vcvt.s32.f32 %v622
    %v1007 = vcvt.s32.f32 %v623
    %v1008 = vcvt.s32.f32 %v624
    %v1009 = vcvt.s32.f32 %v625
    %v1010 = vcvt.s32.f32 %v626
    %v1011 = vcvt.s32.f32 %v627
    %v1012 = vcvt.s32.f32 %v628
    %v1013 = vcvt.s32.f32 %v629
    %v1014 = vcvt.s32.f32 %v630
    %v1015 = vcvt.s32.f32 %v631
    %v1016 = vcvt.s32.f32 %v632
    %v1017 = vcvt.s32.f32 %v633
    %v1018 = vcvt.s32.f32 %v634
    %v1019 = vcvt.s32.f32 %v635
    %v1020 = vcvt.s32.f32 %v636
    %v1021 = vcvt.s32.f32 %v637
    %v1022 = vcvt.s32.f32 %v638
    %v1023 = vcvt.s32.f32 %v639
    %v1024 = vcvt.s32.f32 %v640
    %v1025 = vcvt.s32.f32 %v641
    %v1026 = vcvt.s32.f32 %v642
    %v1027 = vcvt.s32.f32 %v643
    %v1028 = vcvt.s32.f32 %v644
    %v1029 = vcvt.s32.f32 %v645
    %v1030 = vcvt.s32.f32 %v646
    %v1031 = vcvt.s32.f32 %v647
    %v1032 = vcvt.s32.f32 %v648
    %v1033 = vcvt.s32.f32 %v649
    %v1034 = vpack.c.bf16 %v654, %v650
    %v1035 = vpack.c.bf16 %v655, %v651
    %v1036 = vpack.c.bf16 %v656, %v652
    %v1037 = vpack.c.bf16 %v657, %v653
    %v1038 = vpack.c.bf16 %v662, %v658
    %v1039 = vpack.c.bf16 %v663, %v659
    %v1040 = vpack.c.bf16 %v664, %v660
    %v1041 = vpack.c.bf16 %v665, %v661
    %v1042 = vpack.c.bf16 %v670, %v666
    %v1043 = vpack.c.bf16 %v671, %v667
    %v1044 = vpack.c.bf16 %v672, %v668
    %v1045 = vpack.c.bf16 %v673, %v669
    %v1046 = vpack.c.bf16 %v678, %v674
    %v1047 = vpack.c.bf16 %v679, %v675
    %v1048 = vpack.c.bf16 %v680, %v676
    %v1049 = vpack.c.bf16 %v681, %v677
    %v1050 = vpack.c.bf16 %v686, %v682
    %v1051 = vpack.c.bf16 %v687, %v683
    %v1052 = vpack.c.bf16 %v688, %v684
    %v1053 = vpack.c.bf16 %v689, %v685
    %v1054 = vpack.c.bf16 %v694, %v690
    %v1055 = vpack.c.bf16 %v695, %v691
    %v1056 = vpack.c.bf16 %v696, %v692
    %v1057 = vpack.c.bf16 %v697, %v693
    %v1058 = vpack.c.bf16 %v702, %v698
    %v1059 = vpack.c.bf16 %v703, %v699
    %v1060 = vpack.c.bf16 %v704, %v700
    %v1061 = vpack.c.bf16 %v705, %v701
    %v1062 = vpack.c.bf16 %v710, %v706
    %v1063 = vpack.c.bf16 %v711, %v707
    %v1064 = vpack.c.bf16 %v712, %v708
    %v1065 = vpack.c.bf16 %v713, %v709
    %v1066 = vpack.c.bf16 %v718, %v714
    %v1067 = vpack.c.bf16 %v719, %v715
    %v1068 = vpack.c.bf16 %v720, %v716
    %v1069 = vpack.c.bf16 %v721, %v717
    %v1070 = vpack.c.bf16 %v726, %v722
    %v1071 = vpack.c.bf16 %v727, %v723
    %v1072 = vpack.c.bf16 %v728, %v724
    %v1073 = vpack.c.bf16 %v729, %v725
    %v1074 = vpack.c.bf16 %v734, %v730
    %v1075 = vpack.c.bf16 %v735, %v731
    %v1076 = vpack.c.bf16 %v736, %v732
    %v1077 = vpack.c.bf16 %v737, %v733
    %v1078 = vpack.c.bf16 %v742, %v738
    %v1079 = vpack.c.bf16 %v743, %v739
    %v1080 = vpack.c.bf16 %v744, %v740
    %v1081 = vpack.c.bf16 %v745, %v741
    %v1082 = vpack.c.bf16 %v750, %v746
    %v1083 = vpack.c.bf16 %v751, %v747
    %v1084 = vpack.c.bf16 %v752, %v748
    %v1085 = vpack.c.bf16 %v753, %v749
    %v1086 = vpack.c.bf16 %v758, %v754
    %v1087 = vpack.c.bf16 %v759, %v755
    %v1088 = vpack.c.bf16 %v760, %v756
    %v1089 = vpack.c.bf16 %v761, %v757
    %v1090 = vpack.c.bf16 %v766, %v762
    %v1091 = vpack.c.bf16 %v767, %v763
    %v1092 = vpack.c.bf16 %v768, %v764
    %v1093 = vpack.c.bf16 %v769, %v765
    %v1094 = vpack.c.bf16 %v774, %v770
    %v1095 = vpack.c.bf16 %v775, %v771
    %v1096 = vpack.c.bf16 %v776, %v772
    %v1097 = vpack.c.bf16 %v777, %v773
    %v1098 = vpack.c.bf16 %v782, %v778
    %v1099 = vpack.c.bf16 %v783, %v779
    %v1100 = vpack.c.bf16 %v784, %v780
    %v1101 = vpack.c.bf16 %v785, %v781
    %v1102 = vpack.c.bf16 %v790, %v786
    %v1103 = vpack.c.bf16 %v791, %v787
    %v1104 = vpack.c.bf16 %v792, %v788
    %v1105 = vpack.c.bf16 %v793, %v789
    %v1106 = vpack.c.bf16 %v798, %v794
    %v1107 = vpack.c.bf16 %v799, %v795
    %v1108 = vpack.c.bf16 %v800, %v796
    %v1109 = vpack.c.bf16 %v801, %v797
    %v1110 = vpack.c.bf16 %v806, %v802
    %v1111 = vpack.c.bf16 %v807, %v803
    %v1112 = vpack.c.bf16 %v808, %v804
    %v1113 = vpack.c.bf16 %v809, %v805
    %v1114 = vpack.c.bf16 %v814, %v810
    %v1115 = vpack.c.bf16 %v815, %v811
    %v1116 = vpack.c.bf16 %v816, %v812
    %v1117 = vpack.c.bf16 %v817, %v813
    %v1118 = vpack.c.bf16 %v822, %v818
    %v1119 = vpack.c.bf16 %v823, %v819
    %v1120 = vpack.c.bf16 %v824, %v820
    %v1121 = vpack.c.bf16 %v825, %v821
    %v1122 = vpack.c.bf16 %v830, %v826
    %v1123 = vpack.c.bf16 %v831, %v827
    %v1124 = vpack.c.bf16 %v832, %v828
    %v1125 = vpack.c.bf16 %v833, %v829
    %v1126 = vpack.c.bf16 %v838, %v834
    %v1127 = vpack.c.bf16 %v839, %v835
    %v1128 = vpack.c.bf16 %v840, %v836
    %v1129 = vpack.c.bf16 %v841, %v837
    %v1130 = vpack.c.bf16 %v846, %v842
    %v1131 = vpack.c.bf16 %v847, %v843
    %v1132 = vpack.c.bf16 %v848, %v844
    %v1133 = vpack.c.bf16 %v849, %v845
    %v1134 = vpack.c.bf16 %v854, %v850
    %v1135 = vpack.c.bf16 %v855, %v851
    %v1136 = vpack.c.bf16 %v856, %v852
    %v1137 = vpack.c.bf16 %v857, %v853
    %v1138 = vpack.c.bf16 %v862, %v858
    %v1139 = vpack.c.bf16 %v863, %v859
    %v1140 = vpack.c.bf16 %v864, %v860
    %v1141 = vpack.c.bf16 %v865, %v861
    %v1142 = vpack.c.bf16 %v870, %v866
    %v1143 = vpack.c.bf16 %v871, %v867
    %v1144 = vpack.c.bf16 %v872, %v868
    %v1145 = vpack.c.bf16 %v873, %v869
    %v1146 = vpack.c.bf16 %v878, %v874
    %v1147 = vpack.c.bf16 %v879, %v875
    %v1148 = vpack.c.bf16 %v880, %v876
    %v1149 = vpack.c.bf16 %v881, %v877
    %v1150 = vpack.c.bf16 %v886, %v882
    %v1151 = vpack.c.bf16 %v887, %v883
    %v1152 = vpack.c.bf16 %v888, %v884
    %v1153 = vpack.c.bf16 %v889, %v885
    %v1154 = vpack.c.bf16 %v894, %v890
    %v1155 = vpack.c.bf16 %v895, %v891
    %v1156 = vpack.c.bf16 %v896, %v892
    %v1157 = vpack.c.bf16 %v897, %v893
    %v1158 = vpack.c.bf16 %v902, %v898
    %v1159 = vpack.c.bf16 %v903, %v899
    %v1160 = vpack.c.bf16 %v904, %v900
    %v1161 = vpack.c.bf16 %v905, %v901
    %v1162 = vpack.c.bf16 %v910, %v906
    %v1163 = vpack.c.bf16 %v911, %v907
    %v1164 = vpack.c.bf16 %v912, %v908
    %v1165 = vpack.c.bf16 %v913, %v909
    %v1166 = vpack.c.bf16 %v918, %v914
    %v1167 = vpack.c.bf16 %v919, %v915
    %v1168 = vpack.c.bf16 %v920, %v916
    %v1169 = vpack.c.bf16 %v921, %v917
    %v1170 = vpack.c.bf16 %v926, %v922
    %v1171 = vpack.c.bf16 %v927, %v923
    %v1172 = vpack.c.bf16 %v928, %v924
    %v1173 = vpack.c.bf16 %v929, %v925
    %v1174 = vpack.c.bf16 %v934, %v930
    %v1175 = vpack.c.bf16 %v935, %v931
    %v1176 = vpack.c.bf16 %v936, %v932
    %v1177 = vpack.c.bf16 %v937, %v933
    %v1178 = vpack.c.bf16 %v942, %v938
    %v1179 = vpack.c.bf16 %v943, %v939
    %v1180 = vpack.c.bf16 %v944, %v940
    %v1181 = vpack.c.bf16 %v945, %v941
    %v1182 = vpack.c.bf16 %v950, %v946
    %v1183 = vpack.c.bf16 %v951, %v947
    %v1184 = vpack.c.bf16 %v952, %v948
    %v1185 = vpack.c.bf16 %v953, %v949
    %v1186 = vpack.c.bf16 %v958, %v954
    %v1187 = vpack.c.bf16 %v959, %v955
    %v1188 = vpack.c.bf16 %v960, %v956
    %v1189 = vpack.c.bf16 %v961, %v957
    %v1190 = vpack.c.bf16 %v966, %v962
    %v1191 = vpack.c.bf16 %v967, %v963
    %v1192 = vpack.c.bf16 %v968, %v964
    %v1193 = vpack.c.bf16 %v969, %v965
    %v1194 = vpack.c.bf16 %v974, %v970
    %v1195 = vpack.c.bf16 %v975, %v971
    %v1196 = vpack.c.bf16 %v976, %v972
    %v1197 = vpack.c.bf16 %v977, %v973
    %v1198 = vpack.c.bf16 %v982, %v978
    %v1199 = vpack.c.bf16 %v983, %v979
    %v1200 = vpack.c.bf16 %v984, %v980
    %v1201 = vpack.c.bf16 %v985, %v981
    %v1202 = vpack.c.bf16 %v990, %v986
    %v1203 = vpack.c.bf16 %v991, %v987
    %v1204 = vpack.c.bf16 %v992, %v988
    %v1205 = vpack.c.bf16 %v993, %v989
    %v1206 = vpack.c.bf16 %v998, %v994
    %v1207 = vpack.c.bf16 %v999, %v995
    %v1208 = vpack.c.bf16 %v1000, %v996
    %v1209 = vpack.c.bf16 %v1001, %v997
    %v1210 = vpack.c.bf16 %v1006, %v1002
    %v1211 = vpack.c.bf16 %v1007, %v1003
    %v1212 = vpack.c.bf16 %v1008, %v1004
    %v1213 = vpack.c.bf16 %v1009, %v1005
    %v1214 = vpack.c.bf16 %v1014, %v1010
    %v1215 = vpack.c.bf16 %v1015, %v1011
    %v1216 = vpack.c.bf16 %v1016, %v1012
    %v1217 = vpack.c.bf16 %v1017, %v1013
    %v1218 = vpack.c.bf16 %v1022, %v1018
    %v1219 = vpack.c.bf16 %v1023, %v1019
    %v1220 = vpack.c.bf16 %v1024, %v1020
    %v1221 = vpack.c.bf16 %v1025, %v1021
    %v1222 = vpack.c.bf16 %v1030, %v1026
    %v1223 = vpack.c.bf16 %v1031, %v1027
    %v1224 = vpack.c.bf16 %v1032, %v1028
    %v1225 = vpack.c.bf16 %v1033, %v1029
    %v1232 = vunpack.c.l.b16 %v164
    %v1233 = vunpack.c.h.b16 %v164
    %v1234 = vunpack.c.l.b16 %v165
    %v1235 = vunpack.c.h.b16 %v165
    %v1236 = vunpack.c.l.b16 %v166
    %v1237 = vunpack.c.h.b16 %v166
    %v1238 = vunpack.c.l.b16 %v167
    %v1239 = vunpack.c.h.b16 %v167
    %v1240 = vunpack.c.l.b16 %v168
    %v1241 = vunpack.c.h.b16 %v168
    %v1242 = vunpack.c.l.b16 %v169
    %v1243 = vunpack.c.h.b16 %v169
    %v1244 = vpack.c.b16 %v1238, %v1232
    %v1245 = vpack.c.b16 %v1239, %v1233
    %v1246 = vpack.c.b16 %v1240, %v1234
    %v1247 = vpack.c.b16 %v1241, %v1235
    %v1248 = vpack.c.b16 %v1242, %v1236
    %v1249 = vpack.c.b16 %v1243, %v1237
    %1256 = vmatpush.bf16.msra.mxu0 %v1062
    %1257 = vmatpush.bf16.msra.mxu0 %v1058
    %1258 = vmatpush.bf16.msra.mxu0 %v1054
    %1259 = vmatpush.bf16.msra.mxu0 %v1050
    %1260 = vmatpush.bf16.msra.mxu0 %v1046
    %1261 = vmatpush.bf16.msra.mxu0 %v1042
    %1262 = vmatpush.bf16.msra.mxu0 %v1038
    %1263 = vmatpush.bf16.msra.mxu0 %v1034
    %1264 = vmatmul.bf16.gmra.mxu0 %v1244
    %v1265 = vpop.f32.mrf.mxu0
    %v1266 = vadd.f32 0.0, %v1265
    %v1267 = vpop.f32.mrf.mxu0
    %v1268 = vadd.f32 0.0, %v1267
    %1269 = vdwg.mxu0
    %1270 = vmatpush.bf16.msra.mxu0 %v1094
    %1271 = vmatpush.bf16.msra.mxu0 %v1090
    %1272 = vmatpush.bf16.msra.mxu0 %v1086
    %1273 = vmatpush.bf16.msra.mxu0 %v1082
    %1274 = vmatpush.bf16.msra.mxu0 %v1078
    %1275 = vmatpush.bf16.msra.mxu0 %v1074
    %1276 = vmatpush.bf16.msra.mxu0 %v1070
    %1277 = vmatpush.bf16.msra.mxu0 %v1066
    %1278 = vmatmul.bf16.gmra.mxu0 %v1245
    %v1279 = vpop.f32.mrf.mxu0
    %v1280 = vadd.f32 %v1266, %v1279
    %v1281 = vpop.f32.mrf.mxu0
    %v1282 = vadd.f32 %v1268, %v1281
    %1283 = vdwg.mxu0
    %1284 = vmatpush.bf16.msra.mxu0 %v1126
    %1285 = vmatpush.bf16.msra.mxu0 %v1122
    %1286 = vmatpush.bf16.msra.mxu0 %v1118
    %1287 = vmatpush.bf16.msra.mxu0 %v1114
    %1288 = vmatpush.bf16.msra.mxu0 %v1110
    %1289 = vmatpush.bf16.msra.mxu0 %v1106
    %1290 = vmatpush.bf16.msra.mxu0 %v1102
    %1291 = vmatpush.bf16.msra.mxu0 %v1098
    %1292 = vmatmul.bf16.gmra.mxu0 %v1246
    %v1293 = vpop.f32.mrf.mxu0
    %v1294 = vadd.f32 %v1280, %v1293
    %v1295 = vpop.f32.mrf.mxu0
    %v1296 = vadd.f32 %v1282, %v1295
    %1297 = vdwg.mxu0
    %1298 = vmatpush.bf16.msra.mxu0 %v1158
    %1299 = vmatpush.bf16.msra.mxu0 %v1154
    %1300 = vmatpush.bf16.msra.mxu0 %v1150
    %1301 = vmatpush.bf16.msra.mxu0 %v1146
    %1302 = vmatpush.bf16.msra.mxu0 %v1142
    %1303 = vmatpush.bf16.msra.mxu0 %v1138
    %1304 = vmatpush.bf16.msra.mxu0 %v1134
    %1305 = vmatpush.bf16.msra.mxu0 %v1130
    %1306 = vmatmul.bf16.gmra.mxu0 %v1247
    %v1307 = vpop.f32.mrf.mxu0
    %v1308 = vadd.f32 %v1294, %v1307
    %v1309 = vpop.f32.mrf.mxu0
    %v1310 = vadd.f32 %v1296, %v1309
    %1311 = vdwg.mxu0
    %1312 = vmatpush.bf16.msra.mxu0 %v1190
    %1313 = vmatpush.bf16.msra.mxu0 %v1186
    %1314 = vmatpush.bf16.msra.mxu0 %v1182
    %1315 = vmatpush.bf16.msra.mxu0 %v1178
    %1316 = vmatpush.bf16.msra.mxu0 %v1174
    %1317 = vmatpush.bf16.msra.mxu0 %v1170
    %1318 = vmatpush.bf16.msra.mxu0 %v1166
    %1319 = vmatpush.bf16.msra.mxu0 %v1162
    %1320 = vmatmul.bf16.gmra.mxu0 %v1248
    %v1321 = vpop.f32.mrf.mxu0
    %v1322 = vadd.f32 %v1308, %v1321
    %v1323 = vpop.f32.mrf.mxu0
    %v1324 = vadd.f32 %v1310, %v1323
    %1325 = vdwg.mxu0
    %1326 = vmatpush.bf16.msra.mxu0 %v1222
    %1327 = vmatpush.bf16.msra.mxu0 %v1218
    %1328 = vmatpush.bf16.msra.mxu0 %v1214
    %1329 = vmatpush.bf16.msra.mxu0 %v1210
    %1330 = vmatpush.bf16.msra.mxu0 %v1206
    %1331 = vmatpush.bf16.msra.mxu0 %v1202
    %1332 = vmatpush.bf16.msra.mxu0 %v1198
    %1333 = vmatpush.bf16.msra.mxu0 %v1194
    %1334 = vmatmul.bf16.gmra.mxu0 %v1249
    %v1335 = vpop.f32.mrf.mxu0
    %v1336 = vadd.f32 %v1322, %v1335
    %v1337 = vpop.f32.mrf.mxu0
    %v1338 = vadd.f32 %v1324, %v1337
    %1339 = vdwg.mxu0
    %1340 = vmatpush.bf16.msra.mxu0 %v1063
    %1341 = vmatpush.bf16.msra.mxu0 %v1059
    %1342 = vmatpush.bf16.msra.mxu0 %v1055
    %1343 = vmatpush.bf16.msra.mxu0 %v1051
    %1344 = vmatpush.bf16.msra.mxu0 %v1047
    %1345 = vmatpush.bf16.msra.mxu0 %v1043
    %1346 = vmatpush.bf16.msra.mxu0 %v1039
    %1347 = vmatpush.bf16.msra.mxu0 %v1035
    %1348 = vmatmul.bf16.gmra.mxu0 %v1244
    %v1349 = vpop.f32.mrf.mxu0
    %v1350 = vadd.f32 0.0, %v1349
    %v1351 = vpop.f32.mrf.mxu0
    %v1352 = vadd.f32 0.0, %v1351
    %1353 = vdwg.mxu0
    %1354 = vmatpush.bf16.msra.mxu0 %v1095
    %1355 = vmatpush.bf16.msra.mxu0 %v1091
    %1356 = vmatpush.bf16.msra.mxu0 %v1087
    %1357 = vmatpush.bf16.msra.mxu0 %v1083
    %1358 = vmatpush.bf16.msra.mxu0 %v1079
    %1359 = vmatpush.bf16.msra.mxu0 %v1075
    %1360 = vmatpush.bf16.msra.mxu0 %v1071
    %1361 = vmatpush.bf16.msra.mxu0 %v1067
    %1362 = vmatmul.bf16.gmra.mxu0 %v1245
    %v1363 = vpop.f32.mrf.mxu0
    %v1364 = vadd.f32 %v1350, %v1363
    %v1365 = vpop.f32.mrf.mxu0
    %v1366 = vadd.f32 %v1352, %v1365
    %1367 = vdwg.mxu0
    %1368 = vmatpush.bf16.msra.mxu0 %v1127
    %1369 = vmatpush.bf16.msra.mxu0 %v1123
    %1370 = vmatpush.bf16.msra.mxu0 %v1119
    %1371 = vmatpush.bf16.msra.mxu0 %v1115
    %1372 = vmatpush.bf16.msra.mxu0 %v1111
    %1373 = vmatpush.bf16.msra.mxu0 %v1107
    %1374 = vmatpush.bf16.msra.mxu0 %v1103
    %1375 = vmatpush.bf16.msra.mxu0 %v1099
    %1376 = vmatmul.bf16.gmra.mxu0 %v1246
    %v1377 = vpop.f32.mrf.mxu0
    %v1378 = vadd.f32 %v1364, %v1377
    %v1379 = vpop.f32.mrf.mxu0
    %v1380 = vadd.f32 %v1366, %v1379
    %1381 = vdwg.mxu0
    %1382 = vmatpush.bf16.msra.mxu0 %v1159
    %1383 = vmatpush.bf16.msra.mxu0 %v1155
    %1384 = vmatpush.bf16.msra.mxu0 %v1151
    %1385 = vmatpush.bf16.msra.mxu0 %v1147
    %1386 = vmatpush.bf16.msra.mxu0 %v1143
    %1387 = vmatpush.bf16.msra.mxu0 %v1139
    %1388 = vmatpush.bf16.msra.mxu0 %v1135
    %1389 = vmatpush.bf16.msra.mxu0 %v1131
    %1390 = vmatmul.bf16.gmra.mxu0 %v1247
    %v1391 = vpop.f32.mrf.mxu0
    %v1392 = vadd.f32 %v1378, %v1391
    %v1393 = vpop.f32.mrf.mxu0
    %v1394 = vadd.f32 %v1380, %v1393
    %1395 = vdwg.mxu0
    %1396 = vmatpush.bf16.msra.mxu0 %v1191
    %1397 = vmatpush.bf16.msra.mxu0 %v1187
    %1398 = vmatpush.bf16.msra.mxu0 %v1183
    %1399 = vmatpush.bf16.msra.mxu0 %v1179
    %1400 = vmatpush.bf16.msra.mxu0 %v1175
    %1401 = vmatpush.bf16.msra.mxu0 %v1171
    %1402 = vmatpush.bf16.msra.mxu0 %v1167
    %1403 = vmatpush.bf16.msra.mxu0 %v1163
    %1404 = vmatmul.bf16.gmra.mxu0 %v1248
    %v1405 = vpop.f32.mrf.mxu0
    %v1406 = vadd.f32 %v1392, %v1405
    %v1407 = vpop.f32.mrf.mxu0
    %v1408 = vadd.f32 %v1394, %v1407
    %1409 = vdwg.mxu0
    %1410 = vmatpush.bf16.msra.mxu0 %v1223
    %1411 = vmatpush.bf16.msra.mxu0 %v1219
    %1412 = vmatpush.bf16.msra.mxu0 %v1215
    %1413 = vmatpush.bf16.msra.mxu0 %v1211
    %1414 = vmatpush.bf16.msra.mxu0 %v1207
    %1415 = vmatpush.bf16.msra.mxu0 %v1203
    %1416 = vmatpush.bf16.msra.mxu0 %v1199
    %1417 = vmatpush.bf16.msra.mxu0 %v1195
    %1418 = vmatmul.bf16.gmra.mxu0 %v1249
    %v1419 = vpop.f32.mrf.mxu0
    %v1420 = vadd.f32 %v1406, %v1419
    %v1421 = vpop.f32.mrf.mxu0
    %v1422 = vadd.f32 %v1408, %v1421
    %1423 = vdwg.mxu0
    %1424 = vmatpush.bf16.msra.mxu0 %v1064
    %1425 = vmatpush.bf16.msra.mxu0 %v1060
    %1426 = vmatpush.bf16.msra.mxu0 %v1056
    %1427 = vmatpush.bf16.msra.mxu0 %v1052
    %1428 = vmatpush.bf16.msra.mxu0 %v1048
    %1429 = vmatpush.bf16.msra.mxu0 %v1044
    %1430 = vmatpush.bf16.msra.mxu0 %v1040
    %1431 = vmatpush.bf16.msra.mxu0 %v1036
    %1432 = vmatmul.bf16.gmra.mxu0 %v1244
    %v1433 = vpop.f32.mrf.mxu0
    %v1434 = vadd.f32 0.0, %v1433
    %v1435 = vpop.f32.mrf.mxu0
    %v1436 = vadd.f32 0.0, %v1435
    %1437 = vdwg.mxu0
    %1438 = vmatpush.bf16.msra.mxu0 %v1096
    %1439 = vmatpush.bf16.msra.mxu0 %v1092
    %1440 = vmatpush.bf16.msra.mxu0 %v1088
    %1441 = vmatpush.bf16.msra.mxu0 %v1084
    %1442 = vmatpush.bf16.msra.mxu0 %v1080
    %1443 = vmatpush.bf16.msra.mxu0 %v1076
    %1444 = vmatpush.bf16.msra.mxu0 %v1072
    %1445 = vmatpush.bf16.msra.mxu0 %v1068
    %1446 = vmatmul.bf16.gmra.mxu0 %v1245
    %v1447 = vpop.f32.mrf.mxu0
    %v1448 = vadd.f32 %v1434, %v1447
    %v1449 = vpop.f32.mrf.mxu0
    %v1450 = vadd.f32 %v1436, %v1449
    %1451 = vdwg.mxu0
    %1452 = vmatpush.bf16.msra.mxu0 %v1128
    %1453 = vmatpush.bf16.msra.mxu0 %v1124
    %1454 = vmatpush.bf16.msra.mxu0 %v1120
    %1455 = vmatpush.bf16.msra.mxu0 %v1116
    %1456 = vmatpush.bf16.msra.mxu0 %v1112
    %1457 = vmatpush.bf16.msra.mxu0 %v1108
    %1458 = vmatpush.bf16.msra.mxu0 %v1104
    %1459 = vmatpush.bf16.msra.mxu0 %v1100
    %1460 = vmatmul.bf16.gmra.mxu0 %v1246
    %v1461 = vpop.f32.mrf.mxu0
    %v1462 = vadd.f32 %v1448, %v1461
    %v1463 = vpop.f32.mrf.mxu0
    %v1464 = vadd.f32 %v1450, %v1463
    %1465 = vdwg.mxu0
    %1466 = vmatpush.bf16.msra.mxu0 %v1160
    %1467 = vmatpush.bf16.msra.mxu0 %v1156
    %1468 = vmatpush.bf16.msra.mxu0 %v1152
    %1469 = vmatpush.bf16.msra.mxu0 %v1148
    %1470 = vmatpush.bf16.msra.mxu0 %v1144
    %1471 = vmatpush.bf16.msra.mxu0 %v1140
    %1472 = vmatpush.bf16.msra.mxu0 %v1136
    %1473 = vmatpush.bf16.msra.mxu0 %v1132
    %1474 = vmatmul.bf16.gmra.mxu0 %v1247
    %v1475 = vpop.f32.mrf.mxu0
    %v1476 = vadd.f32 %v1462, %v1475
    %v1477 = vpop.f32.mrf.mxu0
    %v1478 = vadd.f32 %v1464, %v1477
    %1479 = vdwg.mxu0
    %1480 = vmatpush.bf16.msra.mxu0 %v1192
    %1481 = vmatpush.bf16.msra.mxu0 %v1188
    %1482 = vmatpush.bf16.msra.mxu0 %v1184
    %1483 = vmatpush.bf16.msra.mxu0 %v1180
    %1484 = vmatpush.bf16.msra.mxu0 %v1176
    %1485 = vmatpush.bf16.msra.mxu0 %v1172
    %1486 = vmatpush.bf16.msra.mxu0 %v1168
    %1487 = vmatpush.bf16.msra.mxu0 %v1164
    %1488 = vmatmul.bf16.gmra.mxu0 %v1248
    %v1489 = vpop.f32.mrf.mxu0
    %v1490 = vadd.f32 %v1476, %v1489
    %v1491 = vpop.f32.mrf.mxu0
    %v1492 = vadd.f32 %v1478, %v1491
    %1493 = vdwg.mxu0
    %1494 = vmatpush.bf16.msra.mxu0 %v1224
    %1495 = vmatpush.bf16.msra.mxu0 %v1220
    %1496 = vmatpush.bf16.msra.mxu0 %v1216
    %1497 = vmatpush.bf16.msra.mxu0 %v1212
    %1498 = vmatpush.bf16.msra.mxu0 %v1208
    %1499 = vmatpush.bf16.msra.mxu0 %v1204
    %1500 = vmatpush.bf16.msra.mxu0 %v1200
    %1501 = vmatpush.bf16.msra.mxu0 %v1196
    %1502 = vmatmul.bf16.gmra.mxu0 %v1249
    %v1503 = vpop.f32.mrf.mxu0
    %v1504 = vadd.f32 %v1490, %v1503
    %v1505 = vpop.f32.mrf.mxu0
    %v1506 = vadd.f32 %v1492, %v1505
    %1507 = vdwg.mxu0
    %1508 = vmatpush.bf16.msra.mxu0 %v1065
    %1509 = vmatpush.bf16.msra.mxu0 %v1061
    %1510 = vmatpush.bf16.msra.mxu0 %v1057
    %1511 = vmatpush.bf16.msra.mxu0 %v1053
    %1512 = vmatpush.bf16.msra.mxu0 %v1049
    %1513 = vmatpush.bf16.msra.mxu0 %v1045
    %1514 = vmatpush.bf16.msra.mxu0 %v1041
    %1515 = vmatpush.bf16.msra.mxu0 %v1037
    %1516 = vmatmul.bf16.gmra.mxu0 %v1244
    %v1517 = vpop.f32.mrf.mxu0
    %v1518 = vadd.f32 0.0, %v1517
    %v1519 = vpop.f32.mrf.mxu0
    %v1520 = vadd.f32 0.0, %v1519
    %1521 = vdwg.mxu0
    %1522 = vmatpush.bf16.msra.mxu0 %v1097
    %1523 = vmatpush.bf16.msra.mxu0 %v1093
    %1524 = vmatpush.bf16.msra.mxu0 %v1089
    %1525 = vmatpush.bf16.msra.mxu0 %v1085
    %1526 = vmatpush.bf16.msra.mxu0 %v1081
    %1527 = vmatpush.bf16.msra.mxu0 %v1077
    %1528 = vmatpush.bf16.msra.mxu0 %v1073
    %1529 = vmatpush.bf16.msra.mxu0 %v1069
    %1530 = vmatmul.bf16.gmra.mxu0 %v1245
    %v1531 = vpop.f32.mrf.mxu0
    %v1532 = vadd.f32 %v1518, %v1531
    %v1533 = vpop.f32.mrf.mxu0
    %v1534 = vadd.f32 %v1520, %v1533
    %1535 = vdwg.mxu0
    %1536 = vmatpush.bf16.msra.mxu0 %v1129
    %1537 = vmatpush.bf16.msra.mxu0 %v1125
    %1538 = vmatpush.bf16.msra.mxu0 %v1121
    %1539 = vmatpush.bf16.msra.mxu0 %v1117
    %1540 = vmatpush.bf16.msra.mxu0 %v1113
    %1541 = vmatpush.bf16.msra.mxu0 %v1109
    %1542 = vmatpush.bf16.msra.mxu0 %v1105
    %1543 = vmatpush.bf16.msra.mxu0 %v1101
    %1544 = vmatmul.bf16.gmra.mxu0 %v1246
    %v1545 = vpop.f32.mrf.mxu0
    %v1546 = vadd.f32 %v1532, %v1545
    %v1547 = vpop.f32.mrf.mxu0
    %v1548 = vadd.f32 %v1534, %v1547
    %1549 = vdwg.mxu0
    %1550 = vmatpush.bf16.msra.mxu0 %v1161
    %1551 = vmatpush.bf16.msra.mxu0 %v1157
    %1552 = vmatpush.bf16.msra.mxu0 %v1153
    %1553 = vmatpush.bf16.msra.mxu0 %v1149
    %1554 = vmatpush.bf16.msra.mxu0 %v1145
    %1555 = vmatpush.bf16.msra.mxu0 %v1141
    %1556 = vmatpush.bf16.msra.mxu0 %v1137
    %1557 = vmatpush.bf16.msra.mxu0 %v1133
    %1558 = vmatmul.bf16.gmra.mxu0 %v1247
    %v1559 = vpop.f32.mrf.mxu0
    %v1560 = vadd.f32 %v1546, %v1559
    %v1561 = vpop.f32.mrf.mxu0
    %v1562 = vadd.f32 %v1548, %v1561
    %1563 = vdwg.mxu0
    %1564 = vmatpush.bf16.msra.mxu0 %v1193
    %1565 = vmatpush.bf16.msra.mxu0 %v1189
    %1566 = vmatpush.bf16.msra.mxu0 %v1185
    %1567 = vmatpush.bf16.msra.mxu0 %v1181
    %1568 = vmatpush.bf16.msra.mxu0 %v1177
    %1569 = vmatpush.bf16.msra.mxu0 %v1173
    %1570 = vmatpush.bf16.msra.mxu0 %v1169
    %1571 = vmatpush.bf16.msra.mxu0 %v1165
    %1572 = vmatmul.bf16.gmra.mxu0 %v1248
    %v1573 = vpop.f32.mrf.mxu0
    %v1574 = vadd.f32 %v1560, %v1573
    %v1575 = vpop.f32.mrf.mxu0
    %v1576 = vadd.f32 %v1562, %v1575
    %1577 = vdwg.mxu0
    %1578 = vmatpush.bf16.msra.mxu0 %v1225
    %1579 = vmatpush.bf16.msra.mxu0 %v1221
    %1580 = vmatpush.bf16.msra.mxu0 %v1217
    %1581 = vmatpush.bf16.msra.mxu0 %v1213
    %1582 = vmatpush.bf16.msra.mxu0 %v1209
    %1583 = vmatpush.bf16.msra.mxu0 %v1205
    %1584 = vmatpush.bf16.msra.mxu0 %v1201
    %1585 = vmatpush.bf16.msra.mxu0 %v1197
    %1586 = vmatmul.bf16.gmra.mxu0 %v1249
    %v1587 = vpop.f32.mrf.mxu0
    %v1588 = vadd.f32 %v1574, %v1587
    %v1589 = vpop.f32.mrf.mxu0
    %v1590 = vadd.f32 %v1576, %v1589
    %1591 = vdwg.mxu0
    %v1592 = vadd.f32 %v156, %v1336
    %v1593 = vadd.f32 %v157, %v1420
    %v1594 = vadd.f32 %v158, %v1504
    %v1595 = vadd.f32 %v159, %v1588
    %v1596 = vadd.f32 %v160, %v1338
    %v1597 = vadd.f32 %v161, %v1422
    %v1598 = vadd.f32 %v162, %v1506
    %v1599 = vadd.f32 %v163, %v1590
    %1600 = vst [vmem:[#allocation2] sm:$0xff] %v1592
    %1601 = vst [vmem:[#allocation2 + $0x8] sm:$0xff] %v1593
    %1602 = vst [vmem:[#allocation2 + $0x10] sm:$0xff] %v1594
    %1603 = vst [vmem:[#allocation2 + $0x18] sm:$0xff] %v1595
    %1604 = vst [vmem:[#allocation2 + $0x20] sm:$0xff] %v1596
    %1605 = vst [vmem:[#allocation2 + $0x28] sm:$0xff] %v1597
    %1606 = vst [vmem:[#allocation2 + $0x30] sm:$0xff] %v1598
    %1607 = vst [vmem:[#allocation2 + $0x38] sm:$0xff] %v1599
    // Predicated region
    $region74: #{tpu_custom_call.1} parent=1 // pred_check
      %p1608 = pneg %p144
    $region75: #{tpu_custom_call.1} parent=1 // pred_check_branch
      %1610 = sbr.rel (%p1608) target = $region77
    $region76: #{tpu_custom_call.1} parent=1 // pred_region
      %v1611 = vld [vmem:[#allocation2] sm:$0xff]
      %v1612 = vld [vmem:[#allocation2 + $0x8] sm:$0xff]
      %v1613 = vld [vmem:[#allocation2 + $0x10] sm:$0xff]
      %v1614 = vld [vmem:[#allocation2 + $0x18] sm:$0xff]
      %v1615 = vld [vmem:[#allocation2 + $0x20] sm:$0xff]
      %v1616 = vld [vmem:[#allocation2 + $0x28] sm:$0xff]
      %v1617 = vld [vmem:[#allocation2 + $0x30] sm:$0xff]
      %v1618 = vld [vmem:[#allocation2 + $0x38] sm:$0xff]
      %v1619 = vld [vmem:[#allocation11] sm:$0xf]
      %v1621 = vperm.slane %v1619, 0
      %v1622 = vperm.slane %v1619, 1
      %v1623 = vperm.slane %v1619, 2
      %v1624 = vperm.slane %v1619, 3
      %v1629 = vmul.f32 %v1611, %v1621
      %v1630 = vmul.f32 %v1612, %v1622
      %v1631 = vmul.f32 %v1613, %v1623
      %v1632 = vmul.f32 %v1614, %v1624
      %v1633 = vmul.f32 %v1615, %v1621
      %v1634 = vmul.f32 %v1616, %v1622
      %v1635 = vmul.f32 %v1617, %v1623
      %v1636 = vmul.f32 %v1618, %v1624
      %v1637 = vld [vmem:[#allocation6] sm:$0xf]
      %v1638 = vld [vmem:[#allocation6 + $0x4] sm:$0xf]
      %v1639 = vld [vmem:[#allocation9] sm:$0xff]
      %v1640 = vld [vmem:[#allocation9 + $0x8] sm:$0xff]
      %v1641 = vld [vmem:[#allocation9 + $0x10] sm:$0xff]
      %v1642 = vld [vmem:[#allocation9 + $0x18] sm:$0xff]
      %v1643 = vld [vmem:[#allocation9 + $0x20] sm:$0xff]
      %v1644 = vld [vmem:[#allocation9 + $0x28] sm:$0xff]
      %v1645 = vld [vmem:[#allocation9 + $0x30] sm:$0xff]
      %v1646 = vld [vmem:[#allocation9 + $0x38] sm:$0xff]
      %v1647 = vld [vmem:[#allocation9 + $0x40] sm:$0xff]
      %v1648 = vld [vmem:[#allocation9 + $0x48] sm:$0xff]
      %v1649 = vld [vmem:[#allocation9 + $0x50] sm:$0xff]
      %v1650 = vld [vmem:[#allocation9 + $0x58] sm:$0xff]
      %v1651 = vld [vmem:[#allocation9 + $0x60] sm:$0x11]
      %v1652 = vld [vmem:[#allocation9 + $0x68] sm:$0x11]
      %v1655 = vunpack.c.l.b16 %v1637
      %v1656 = vunpack.c.l.b16 %v1638
      %v1657 = vpack.c.b16 %v1656, %v1655
      %v1672 = vunpack.c.l.b16 %v1639
      %v1673 = vunpack.c.h.b16 %v1639
      %v1674 = vunpack.c.l.b16 %v1640
      %v1675 = vunpack.c.h.b16 %v1640
      %v1676 = vunpack.c.l.b16 %v1641
      %v1677 = vunpack.c.h.b16 %v1641
      %v1678 = vunpack.c.l.b16 %v1642
      %v1679 = vunpack.c.h.b16 %v1642
      %v1680 = vunpack.c.l.b16 %v1643
      %v1681 = vunpack.c.h.b16 %v1643
      %v1682 = vunpack.c.l.b16 %v1644
      %v1683 = vunpack.c.h.b16 %v1644
      %v1684 = vunpack.c.l.b16 %v1645
      %v1685 = vunpack.c.h.b16 %v1645
      %v1686 = vunpack.c.l.b16 %v1646
      %v1687 = vunpack.c.h.b16 %v1646
      %v1688 = vunpack.c.l.b16 %v1647
      %v1689 = vunpack.c.h.b16 %v1647
      %v1690 = vunpack.c.l.b16 %v1648
      %v1691 = vunpack.c.h.b16 %v1648
      %v1692 = vunpack.c.l.b16 %v1649
      %v1693 = vunpack.c.h.b16 %v1649
      %v1694 = vunpack.c.l.b16 %v1650
      %v1695 = vunpack.c.h.b16 %v1650
      %v1696 = vunpack.c.l.b16 %v1651
      %v1697 = vunpack.c.h.b16 %v1651
      %v1698 = vunpack.c.l.b16 %v1652
      %v1699 = vunpack.c.h.b16 %v1652
      %v1700 = vpack.c.b16 %v1676, %v1672
      %v1701 = vpack.c.b16 %v1677, %v1673
      %v1702 = vpack.c.b16 %v1678, %v1674
      %v1703 = vpack.c.b16 %v1679, %v1675
      %v1704 = vpack.c.b16 %v1684, %v1680
      %v1705 = vpack.c.b16 %v1685, %v1681
      %v1706 = vpack.c.b16 %v1686, %v1682
      %v1707 = vpack.c.b16 %v1687, %v1683
      %v1708 = vpack.c.b16 %v1692, %v1688
      %v1709 = vpack.c.b16 %v1693, %v1689
      %v1710 = vpack.c.b16 %v1694, %v1690
      %v1711 = vpack.c.b16 %v1695, %v1691
      %v1712 = vpack.c.b16 %v1696, %v1696
      %v1713 = vpack.c.b16 %v1697, %v1697
      %v1714 = vpack.c.b16 %v1698, %v1698
      %v1715 = vpack.c.b16 %v1699, %v1699
      %vm1728 = vcmask 408576
      %v1730 = vsel %vm1728, %v1657, 0
      %vm1732 = vcmask 1040384
      %v1734 = vsel %vm1732, %v1712, 0
      %v1737 = vsel %vm1732, %v1713, 0
      %v1740 = vsel %vm1732, %v1714, 0
      %v1743 = vsel %vm1732, %v1715, 0
      %1745 = vmatpush.bf16.msra.mxu0 0
      %1746 = vmatpush.bf16.msra.mxu0 0
      %1747 = vmatpush.bf16.msra.mxu0 0
      %1748 = vmatpush.bf16.msra.mxu0 0
      %1749 = vmatpush.bf16.msra.mxu0 %v1734
      %1750 = vmatpush.bf16.msra.mxu0 %v1708
      %1751 = vmatpush.bf16.msra.mxu0 %v1704
      %1752 = vmatpush.bf16.msra.mxu0 %v1700
      %1753 = vmatmul.bf16.gmra.mxu0 %v1730
      %v1754 = vpop.f32.mrf.mxu0
      %v1755 = vadd.f32 0.0, %v1754
      %v1756 = vpop.f32.mrf.mxu0
      %v1757 = vadd.f32 0.0, %v1756
      %1758 = vdwg.mxu0
      %1759 = vmatpush.bf16.msra.mxu0 0
      %1760 = vmatpush.bf16.msra.mxu0 0
      %1761 = vmatpush.bf16.msra.mxu0 0
      %1762 = vmatpush.bf16.msra.mxu0 0
      %1763 = vmatpush.bf16.msra.mxu0 %v1737
      %1764 = vmatpush.bf16.msra.mxu0 %v1709
      %1765 = vmatpush.bf16.msra.mxu0 %v1705
      %1766 = vmatpush.bf16.msra.mxu0 %v1701
      %1767 = vmatmul.bf16.gmra.mxu0 %v1730
      %v1768 = vpop.f32.mrf.mxu0
      %v1769 = vadd.f32 0.0, %v1768
      %v1770 = vpop.f32.mrf.mxu0
      %v1771 = vadd.f32 0.0, %v1770
      %1772 = vdwg.mxu0
      %1773 = vmatpush.bf16.msra.mxu0 0
      %1774 = vmatpush.bf16.msra.mxu0 0
      %1775 = vmatpush.bf16.msra.mxu0 0
      %1776 = vmatpush.bf16.msra.mxu0 0
      %1777 = vmatpush.bf16.msra.mxu0 %v1740
      %1778 = vmatpush.bf16.msra.mxu0 %v1710
      %1779 = vmatpush.bf16.msra.mxu0 %v1706
      %1780 = vmatpush.bf16.msra.mxu0 %v1702
      %1781 = vmatmul.bf16.gmra.mxu0 %v1730
      %v1782 = vpop.f32.mrf.mxu0
      %v1783 = vadd.f32 0.0, %v1782
      %v1784 = vpop.f32.mrf.mxu0
      %v1785 = vadd.f32 0.0, %v1784
      %1786 = vdwg.mxu0
      %1787 = vmatpush.bf16.msra.mxu0 0
      %1788 = vmatpush.bf16.msra.mxu0 0
      %1789 = vmatpush.bf16.msra.mxu0 0
      %1790 = vmatpush.bf16.msra.mxu0 0
      %1791 = vmatpush.bf16.msra.mxu0 %v1743
      %1792 = vmatpush.bf16.msra.mxu0 %v1711
      %1793 = vmatpush.bf16.msra.mxu0 %v1707
      %1794 = vmatpush.bf16.msra.mxu0 %v1703
      %1795 = vmatmul.bf16.gmra.mxu0 %v1730
      %v1796 = vpop.f32.mrf.mxu0
      %v1797 = vadd.f32 0.0, %v1796
      %v1798 = vpop.f32.mrf.mxu0
      %v1799 = vadd.f32 0.0, %v1798
      %1800 = vdwg.mxu0
      %v1801 = vadd.f32 %v1629, %v1755
      %v1802 = vadd.f32 %v1630, %v1769
      %v1803 = vadd.f32 %v1631, %v1783
      %v1804 = vadd.f32 %v1632, %v1797
      %v1805 = vadd.f32 %v1633, %v1757
      %v1806 = vadd.f32 %v1634, %v1771
      %v1807 = vadd.f32 %v1635, %v1785
      %v1808 = vadd.f32 %v1636, %v1799
      %v1809 = vld [vmem:[%s5] sm:$0xf]
      %v1811 = vperm.slane %v1809, 0
      %v1812 = vperm.slane %v1809, 1
      %v1813 = vperm.slane %v1809, 2
      %v1814 = vperm.slane %v1809, 3
      %v1819 = vadd.f32 %v1801, %v1811
      %v1820 = vadd.f32 %v1802, %v1812
      %v1821 = vadd.f32 %v1803, %v1813
      %v1822 = vadd.f32 %v1804, %v1814
      %v1823 = vadd.f32 %v1805, %v1811
      %v1824 = vadd.f32 %v1806, %v1812
      %v1825 = vadd.f32 %v1807, %v1813
      %v1826 = vadd.f32 %v1808, %v1814
      %vm1827 = vcmp.gt.f32.partialorder %v1819, 0.0
      %vm1828 = vcmp.gt.f32.partialorder %v1820, 0.0
      %vm1829 = vcmp.gt.f32.partialorder %v1821, 0.0
      %vm1830 = vcmp.gt.f32.partialorder %v1822, 0.0
      %vm1831 = vcmp.gt.f32.partialorder %v1823, 0.0
      %vm1832 = vcmp.gt.f32.partialorder %v1824, 0.0
      %vm1833 = vcmp.gt.f32.partialorder %v1825, 0.0
      %vm1834 = vcmp.gt.f32.partialorder %v1826, 0.0
      %v1835 = vmul.f32 %v1819, 0.2
      %v1836 = vmul.f32 %v1820, 0.2
      %v1837 = vmul.f32 %v1821, 0.2
      %v1838 = vmul.f32 %v1822, 0.2
      %v1839 = vmul.f32 %v1823, 0.2
      %v1840 = vmul.f32 %v1824, 0.2
      %v1841 = vmul.f32 %v1825, 0.2
      %v1842 = vmul.f32 %v1826, 0.2
      %v1843 = vsel %vm1827, %v1819, %v1835
      %v1844 = vsel %vm1828, %v1820, %v1836
      %v1845 = vsel %vm1829, %v1821, %v1837
      %v1846 = vsel %vm1830, %v1822, %v1838
      %v1847 = vsel %vm1831, %v1823, %v1839
      %v1848 = vsel %vm1832, %v1824, %v1840
      %v1849 = vsel %vm1833, %v1825, %v1841
      %v1850 = vsel %vm1834, %v1826, %v1842
      %v1851 = vpack.c.bf16 %v1847, %v1843
      %v1852 = vpack.c.bf16 %v1848, %v1844
      %v1853 = vpack.c.bf16 %v1849, %v1845
      %v1854 = vpack.c.bf16 %v1850, %v1846
      %v1855 = vld [vmem:[#allocation12] sm:$0xff]
      %v1856 = vld [vmem:[#allocation12 + $0x8] sm:$0xff]
      %v1857 = vld [vmem:[#allocation12 + $0x10] sm:$0xff]
      %v1858 = vld [vmem:[#allocation12 + $0x18] sm:$0xff]
      %v1859 = vld [vmem:[#allocation12 + $0x20] sm:$0xff]
      %v1860 = vld [vmem:[#allocation12 + $0x28] sm:$0xff]
      %v1861 = vld [vmem:[#allocation12 + $0x30] sm:$0xff]
      %v1862 = vld [vmem:[#allocation12 + $0x38] sm:$0xff]
      %v1863 = vld [vmem:[#allocation12 + $0x40] sm:$0xff]
      %v1864 = vld [vmem:[#allocation12 + $0x48] sm:$0xff]
      %v1865 = vld [vmem:[#allocation12 + $0x50] sm:$0xff]
      %v1866 = vld [vmem:[#allocation12 + $0x58] sm:$0xff]
      %v1867 = vld [vmem:[#allocation12 + $0x60] sm:$0xff]
      %v1868 = vld [vmem:[#allocation12 + $0x68] sm:$0xff]
      %v1869 = vld [vmem:[#allocation12 + $0x70] sm:$0xff]
      %v1870 = vld [vmem:[#allocation12 + $0x78] sm:$0xff]
      %v1871 = vld [vmem:[#allocation12 + $0x80] sm:$0xff]
      %v1872 = vld [vmem:[#allocation12 + $0x88] sm:$0xff]
      %v1873 = vld [vmem:[#allocation12 + $0x90] sm:$0xff]
      %v1874 = vld [vmem:[#allocation12 + $0x98] sm:$0xff]
      %v1875 = vld [vmem:[#allocation12 + $0xa0] sm:$0xff]
      %v1876 = vld [vmem:[#allocation12 + $0xa8] sm:$0xff]
      %v1877 = vld [vmem:[#allocation12 + $0xb0] sm:$0xff]
      %v1878 = vld [vmem:[#allocation12 + $0xb8] sm:$0xff]
      %v1879 = vld [vmem:[#allocation12 + $0xc0] sm:$0xff]
      %v1880 = vld [vmem:[#allocation12 + $0xc8] sm:$0xff]
      %v1881 = vld [vmem:[#allocation12 + $0xd0] sm:$0xff]
      %v1882 = vld [vmem:[#allocation12 + $0xd8] sm:$0xff]
      %v1883 = vld [vmem:[#allocation12 + $0xe0] sm:$0xff]
      %v1884 = vld [vmem:[#allocation12 + $0xe8] sm:$0xff]
      %v1885 = vld [vmem:[#allocation12 + $0xf0] sm:$0xff]
      %v1886 = vld [vmem:[#allocation12 + $0xf8] sm:$0xff]
      %v1887 = vld [vmem:[#allocation12 + $0x100] sm:$0xff]
      %v1888 = vld [vmem:[#allocation12 + $0x108] sm:$0xff]
      %v1889 = vld [vmem:[#allocation12 + $0x110] sm:$0xff]
      %v1890 = vld [vmem:[#allocation12 + $0x118] sm:$0xff]
      %v1891 = vld [vmem:[#allocation12 + $0x120] sm:$0xff]
      %v1892 = vld [vmem:[#allocation12 + $0x128] sm:$0xff]
      %v1893 = vld [vmem:[#allocation12 + $0x130] sm:$0xff]
      %v1894 = vld [vmem:[#allocation12 + $0x138] sm:$0xff]
      %v1895 = vld [vmem:[#allocation12 + $0x140] sm:$0xff]
      %v1896 = vld [vmem:[#allocation12 + $0x148] sm:$0xff]
      %v1897 = vld [vmem:[#allocation12 + $0x150] sm:$0xff]
      %v1898 = vld [vmem:[#allocation12 + $0x158] sm:$0xff]
      %v1899 = vld [vmem:[#allocation12 + $0x160] sm:$0xff]
      %v1900 = vld [vmem:[#allocation12 + $0x168] sm:$0xff]
      %v1901 = vld [vmem:[#allocation12 + $0x170] sm:$0xff]
      %v1902 = vld [vmem:[#allocation12 + $0x178] sm:$0xff]
      %v1903 = vld [vmem:[#allocation12 + $0x180] sm:$0xff]
      %v1904 = vld [vmem:[#allocation12 + $0x188] sm:$0xff]
      %v1905 = vld [vmem:[#allocation12 + $0x190] sm:$0xff]
      %v1906 = vld [vmem:[#allocation12 + $0x198] sm:$0xff]
      %v1907 = vld [vmem:[#allocation12 + $0x1a0] sm:$0xff]
      %v1908 = vld [vmem:[#allocation12 + $0x1a8] sm:$0xff]
      %v1909 = vld [vmem:[#allocation12 + $0x1b0] sm:$0xff]
      %v1910 = vld [vmem:[#allocation12 + $0x1b8] sm:$0xff]
      %v1911 = vld [vmem:[#allocation12 + $0x1c0] sm:$0xff]
      %v1912 = vld [vmem:[#allocation12 + $0x1c8] sm:$0xff]
      %v1913 = vld [vmem:[#allocation12 + $0x1d0] sm:$0xff]
      %v1914 = vld [vmem:[#allocation12 + $0x1d8] sm:$0xff]
      %v1915 = vld [vmem:[#allocation12 + $0x1e0] sm:$0xff]
      %v1916 = vld [vmem:[#allocation12 + $0x1e8] sm:$0xff]
      %v1917 = vld [vmem:[#allocation12 + $0x1f0] sm:$0xff]
      %v1918 = vld [vmem:[#allocation12 + $0x1f8] sm:$0xff]
      %v1919 = vld [vmem:[%s7] sm:$0x3]
      %v1921 = vperm.slane %v1919, 0
      %v1922 = vperm.slane %v1919, 1
      %v1989 = vunpack.c.l.b16 %v1855
      %v1990 = vunpack.c.h.b16 %v1855
      %v1991 = vunpack.c.l.b16 %v1856
      %v1992 = vunpack.c.h.b16 %v1856
      %v1993 = vunpack.c.l.b16 %v1857
      %v1994 = vunpack.c.h.b16 %v1857
      %v1995 = vunpack.c.l.b16 %v1858
      %v1996 = vunpack.c.h.b16 %v1858
      %v1997 = vunpack.c.l.b16 %v1859
      %v1998 = vunpack.c.h.b16 %v1859
      %v1999 = vunpack.c.l.b16 %v1860
      %v2000 = vunpack.c.h.b16 %v1860
      %v2001 = vunpack.c.l.b16 %v1861
      %v2002 = vunpack.c.h.b16 %v1861
      %v2003 = vunpack.c.l.b16 %v1862
      %v2004 = vunpack.c.h.b16 %v1862
      %v2005 = vunpack.c.l.b16 %v1863
      %v2006 = vunpack.c.h.b16 %v1863
      %v2007 = vunpack.c.l.b16 %v1864
      %v2008 = vunpack.c.h.b16 %v1864
      %v2009 = vunpack.c.l.b16 %v1865
      %v2010 = vunpack.c.h.b16 %v1865
      %v2011 = vunpack.c.l.b16 %v1866
      %v2012 = vunpack.c.h.b16 %v1866
      %v2013 = vunpack.c.l.b16 %v1867
      %v2014 = vunpack.c.h.b16 %v1867
      %v2015 = vunpack.c.l.b16 %v1868
      %v2016 = vunpack.c.h.b16 %v1868
      %v2017 = vunpack.c.l.b16 %v1869
      %v2018 = vunpack.c.h.b16 %v1869
      %v2019 = vunpack.c.l.b16 %v1870
      %v2020 = vunpack.c.h.b16 %v1870
      %v2021 = vunpack.c.l.b16 %v1871
      %v2022 = vunpack.c.h.b16 %v1871
      %v2023 = vunpack.c.l.b16 %v1872
      %v2024 = vunpack.c.h.b16 %v1872
      %v2025 = vunpack.c.l.b16 %v1873
      %v2026 = vunpack.c.h.b16 %v1873
      %v2027 = vunpack.c.l.b16 %v1874
      %v2028 = vunpack.c.h.b16 %v1874
      %v2029 = vunpack.c.l.b16 %v1875
      %v2030 = vunpack.c.h.b16 %v1875
      %v2031 = vunpack.c.l.b16 %v1876
      %v2032 = vunpack.c.h.b16 %v1876
      %v2033 = vunpack.c.l.b16 %v1877
      %v2034 = vunpack.c.h.b16 %v1877
      %v2035 = vunpack.c.l.b16 %v1878
      %v2036 = vunpack.c.h.b16 %v1878
      %v2037 = vunpack.c.l.b16 %v1879
      %v2038 = vunpack.c.h.b16 %v1879
      %v2039 = vunpack.c.l.b16 %v1880
      %v2040 = vunpack.c.h.b16 %v1880
      %v2041 = vunpack.c.l.b16 %v1881
      %v2042 = vunpack.c.h.b16 %v1881
      %v2043 = vunpack.c.l.b16 %v1882
      %v2044 = vunpack.c.h.b16 %v1882
      %v2045 = vunpack.c.l.b16 %v1883
      %v2046 = vunpack.c.h.b16 %v1883
      %v2047 = vunpack.c.l.b16 %v1884
      %v2048 = vunpack.c.h.b16 %v1884
      %v2049 = vunpack.c.l.b16 %v1885
      %v2050 = vunpack.c.h.b16 %v1885
      %v2051 = vunpack.c.l.b16 %v1886
      %v2052 = vunpack.c.h.b16 %v1886
      %v2053 = vunpack.c.l.b16 %v1887
      %v2054 = vunpack.c.h.b16 %v1887
      %v2055 = vunpack.c.l.b16 %v1888
      %v2056 = vunpack.c.h.b16 %v1888
      %v2057 = vunpack.c.l.b16 %v1889
      %v2058 = vunpack.c.h.b16 %v1889
      %v2059 = vunpack.c.l.b16 %v1890
      %v2060 = vunpack.c.h.b16 %v1890
      %v2061 = vunpack.c.l.b16 %v1891
      %v2062 = vunpack.c.h.b16 %v1891
      %v2063 = vunpack.c.l.b16 %v1892
      %v2064 = vunpack.c.h.b16 %v1892
      %v2065 = vunpack.c.l.b16 %v1893
      %v2066 = vunpack.c.h.b16 %v1893
      %v2067 = vunpack.c.l.b16 %v1894
      %v2068 = vunpack.c.h.b16 %v1894
      %v2069 = vunpack.c.l.b16 %v1895
      %v2070 = vunpack.c.h.b16 %v1895
      %v2071 = vunpack.c.l.b16 %v1896
      %v2072 = vunpack.c.h.b16 %v1896
      %v2073 = vunpack.c.l.b16 %v1897
      %v2074 = vunpack.c.h.b16 %v1897
      %v2075 = vunpack.c.l.b16 %v1898
      %v2076 = vunpack.c.h.b16 %v1898
      %v2077 = vunpack.c.l.b16 %v1899
      %v2078 = vunpack.c.h.b16 %v1899
      %v2079 = vunpack.c.l.b16 %v1900
      %v2080 = vunpack.c.h.b16 %v1900
      %v2081 = vunpack.c.l.b16 %v1901
      %v2082 = vunpack.c.h.b16 %v1901
      %v2083 = vunpack.c.l.b16 %v1902
      %v2084 = vunpack.c.h.b16 %v1902
      %v2085 = vunpack.c.l.b16 %v1903
      %v2086 = vunpack.c.h.b16 %v1903
      %v2087 = vunpack.c.l.b16 %v1904
      %v2088 = vunpack.c.h.b16 %v1904
      %v2089 = vunpack.c.l.b16 %v1905
      %v2090 = vunpack.c.h.b16 %v1905
      %v2091 = vunpack.c.l.b16 %v1906
      %v2092 = vunpack.c.h.b16 %v1906
      %v2093 = vunpack.c.l.b16 %v1907
      %v2094 = vunpack.c.h.b16 %v1907
      %v2095 = vunpack.c.l.b16 %v1908
      %v2096 = vunpack.c.h.b16 %v1908
      %v2097 = vunpack.c.l.b16 %v1909
      %v2098 = vunpack.c.h.b16 %v1909
      %v2099 = vunpack.c.l.b16 %v1910
      %v2100 = vunpack.c.h.b16 %v1910
      %v2101 = vunpack.c.l.b16 %v1911
      %v2102 = vunpack.c.h.b16 %v1911
      %v2103 = vunpack.c.l.b16 %v1912
      %v2104 = vunpack.c.h.b16 %v1912
      %v2105 = vunpack.c.l.b16 %v1913
      %v2106 = vunpack.c.h.b16 %v1913
      %v2107 = vunpack.c.l.b16 %v1914
      %v2108 = vunpack.c.h.b16 %v1914
      %v2109 = vunpack.c.l.b16 %v1915
      %v2110 = vunpack.c.h.b16 %v1915
      %v2111 = vunpack.c.l.b16 %v1916
      %v2112 = vunpack.c.h.b16 %v1916
      %v2113 = vunpack.c.l.b16 %v1917
      %v2114 = vunpack.c.h.b16 %v1917
      %v2115 = vunpack.c.l.b16 %v1918
      %v2116 = vunpack.c.h.b16 %v1918
      %v2117 = vpack.c.b16 %v1991, %v1989
      %v2118 = vpack.c.b16 %v1992, %v1990
      %v2119 = vpack.c.b16 %v1995, %v1993
      %v2120 = vpack.c.b16 %v1996, %v1994
      %v2121 = vpack.c.b16 %v1999, %v1997
      %v2122 = vpack.c.b16 %v2000, %v1998
      %v2123 = vpack.c.b16 %v2003, %v2001
      %v2124 = vpack.c.b16 %v2004, %v2002
      %v2125 = vpack.c.b16 %v2007, %v2005
      %v2126 = vpack.c.b16 %v2008, %v2006
      %v2127 = vpack.c.b16 %v2011, %v2009
      %v2128 = vpack.c.b16 %v2012, %v2010
      %v2129 = vpack.c.b16 %v2015, %v2013
      %v2130 = vpack.c.b16 %v2016, %v2014
      %v2131 = vpack.c.b16 %v2019, %v2017
      %v2132 = vpack.c.b16 %v2020, %v2018
      %v2133 = vpack.c.b16 %v2023, %v2021
      %v2134 = vpack.c.b16 %v2024, %v2022
      %v2135 = vpack.c.b16 %v2027, %v2025
      %v2136 = vpack.c.b16 %v2028, %v2026
      %v2137 = vpack.c.b16 %v2031, %v2029
      %v2138 = vpack.c.b16 %v2032, %v2030
      %v2139 = vpack.c.b16 %v2035, %v2033
      %v2140 = vpack.c.b16 %v2036, %v2034
      %v2141 = vpack.c.b16 %v2039, %v2037
      %v2142 = vpack.c.b16 %v2040, %v2038
      %v2143 = vpack.c.b16 %v2043, %v2041
      %v2144 = vpack.c.b16 %v2044, %v2042
      %v2145 = vpack.c.b16 %v2047, %v2045
      %v2146 = vpack.c.b16 %v2048, %v2046
      %v2147 = vpack.c.b16 %v2051, %v2049
      %v2148 = vpack.c.b16 %v2052, %v2050
      %v2149 = vpack.c.b16 %v2055, %v2053
      %v2150 = vpack.c.b16 %v2056, %v2054
      %v2151 = vpack.c.b16 %v2059, %v2057
      %v2152 = vpack.c.b16 %v2060, %v2058
      %v2153 = vpack.c.b16 %v2063, %v2061
      %v2154 = vpack.c.b16 %v2064, %v2062
      %v2155 = vpack.c.b16 %v2067, %v2065
      %v2156 = vpack.c.b16 %v2068, %v2066
      %v2157 = vpack.c.b16 %v2071, %v2069
      %v2158 = vpack.c.b16 %v2072, %v2070
      %v2159 = vpack.c.b16 %v2075, %v2073
      %v2160 = vpack.c.b16 %v2076, %v2074
      %v2161 = vpack.c.b16 %v2079, %v2077
      %v2162 = vpack.c.b16 %v2080, %v2078
      %v2163 = vpack.c.b16 %v2083, %v2081
      %v2164 = vpack.c.b16 %v2084, %v2082
      %v2165 = vpack.c.b16 %v2087, %v2085
      %v2166 = vpack.c.b16 %v2088, %v2086
      %v2167 = vpack.c.b16 %v2091, %v2089
      %v2168 = vpack.c.b16 %v2092, %v2090
      %v2169 = vpack.c.b16 %v2095, %v2093
      %v2170 = vpack.c.b16 %v2096, %v2094
      %v2171 = vpack.c.b16 %v2099, %v2097
      %v2172 = vpack.c.b16 %v2100, %v2098
      %v2173 = vpack.c.b16 %v2103, %v2101
      %v2174 = vpack.c.b16 %v2104, %v2102
      %v2175 = vpack.c.b16 %v2107, %v2105
      %v2176 = vpack.c.b16 %v2108, %v2106
      %v2177 = vpack.c.b16 %v2111, %v2109
      %v2178 = vpack.c.b16 %v2112, %v2110
      %v2179 = vpack.c.b16 %v2115, %v2113
      %v2180 = vpack.c.b16 %v2116, %v2114
      %2245 = vmatpush.bf16.msra.mxu0 %v2131
      %2246 = vmatpush.bf16.msra.mxu0 %v2129
      %2247 = vmatpush.bf16.msra.mxu0 %v2127
      %2248 = vmatpush.bf16.msra.mxu0 %v2125
      %2249 = vmatpush.bf16.msra.mxu0 %v2123
      %2250 = vmatpush.bf16.msra.mxu0 %v2121
      %2251 = vmatpush.bf16.msra.mxu0 %v2119
      %2252 = vmatpush.bf16.msra.mxu0 %v2117
      %2253 = vmatmul.bf16.gmra.mxu0 %v1851
      %v2254 = vpop.f32.mrf.mxu0
      %v2255 = vadd.f32 %v1921, %v2254
      %v2256 = vpop.f32.mrf.mxu0
      %v2257 = vadd.f32 %v1921, %v2256
      %2258 = vdwg.mxu0
      %2259 = vmatpush.bf16.msra.mxu0 %v2147
      %2260 = vmatpush.bf16.msra.mxu0 %v2145
      %2261 = vmatpush.bf16.msra.mxu0 %v2143
      %2262 = vmatpush.bf16.msra.mxu0 %v2141
      %2263 = vmatpush.bf16.msra.mxu0 %v2139
      %2264 = vmatpush.bf16.msra.mxu0 %v2137
      %2265 = vmatpush.bf16.msra.mxu0 %v2135
      %2266 = vmatpush.bf16.msra.mxu0 %v2133
      %2267 = vmatmul.bf16.gmra.mxu0 %v1852
      %v2268 = vpop.f32.mrf.mxu0
      %v2269 = vadd.f32 %v2255, %v2268
      %v2270 = vpop.f32.mrf.mxu0
      %v2271 = vadd.f32 %v2257, %v2270
      %2272 = vdwg.mxu0
      %2273 = vmatpush.bf16.msra.mxu0 %v2163
      %2274 = vmatpush.bf16.msra.mxu0 %v2161
      %2275 = vmatpush.bf16.msra.mxu0 %v2159
      %2276 = vmatpush.bf16.msra.mxu0 %v2157
      %2277 = vmatpush.bf16.msra.mxu0 %v2155
      %2278 = vmatpush.bf16.msra.mxu0 %v2153
      %2279 = vmatpush.bf16.msra.mxu0 %v2151
      %2280 = vmatpush.bf16.msra.mxu0 %v2149
      %2281 = vmatmul.bf16.gmra.mxu0 %v1853
      %v2282 = vpop.f32.mrf.mxu0
      %v2283 = vadd.f32 %v2269, %v2282
      %v2284 = vpop.f32.mrf.mxu0
      %v2285 = vadd.f32 %v2271, %v2284
      %2286 = vdwg.mxu0
      %2287 = vmatpush.bf16.msra.mxu0 %v2179
      %2288 = vmatpush.bf16.msra.mxu0 %v2177
      %2289 = vmatpush.bf16.msra.mxu0 %v2175
      %2290 = vmatpush.bf16.msra.mxu0 %v2173
      %2291 = vmatpush.bf16.msra.mxu0 %v2171
      %2292 = vmatpush.bf16.msra.mxu0 %v2169
      %2293 = vmatpush.bf16.msra.mxu0 %v2167
      %2294 = vmatpush.bf16.msra.mxu0 %v2165
      %2295 = vmatmul.bf16.gmra.mxu0 %v1854
      %v2296 = vpop.f32.mrf.mxu0
      %v2297 = vadd.f32 %v2283, %v2296
      %v2298 = vpop.f32.mrf.mxu0
      %v2299 = vadd.f32 %v2285, %v2298
      %2300 = vdwg.mxu0
      %2301 = vmatpush.bf16.msra.mxu0 %v2132
      %2302 = vmatpush.bf16.msra.mxu0 %v2130
      %2303 = vmatpush.bf16.msra.mxu0 %v2128
      %2304 = vmatpush.bf16.msra.mxu0 %v2126
      %2305 = vmatpush.bf16.msra.mxu0 %v2124
      %2306 = vmatpush.bf16.msra.mxu0 %v2122
      %2307 = vmatpush.bf16.msra.mxu0 %v2120
      %2308 = vmatpush.bf16.msra.mxu0 %v2118
      %2309 = vmatmul.bf16.gmra.mxu0 %v1851
      %v2310 = vpop.f32.mrf.mxu0
      %v2311 = vadd.f32 %v1922, %v2310
      %v2312 = vpop.f32.mrf.mxu0
      %v2313 = vadd.f32 %v1922, %v2312
      %2314 = vdwg.mxu0
      %2315 = vmatpush.bf16.msra.mxu0 %v2148
      %2316 = vmatpush.bf16.msra.mxu0 %v2146
      %2317 = vmatpush.bf16.msra.mxu0 %v2144
      %2318 = vmatpush.bf16.msra.mxu0 %v2142
      %2319 = vmatpush.bf16.msra.mxu0 %v2140
      %2320 = vmatpush.bf16.msra.mxu0 %v2138
      %2321 = vmatpush.bf16.msra.mxu0 %v2136
      %2322 = vmatpush.bf16.msra.mxu0 %v2134
      %2323 = vmatmul.bf16.gmra.mxu0 %v1852
      %v2324 = vpop.f32.mrf.mxu0
      %v2325 = vadd.f32 %v2311, %v2324
      %v2326 = vpop.f32.mrf.mxu0
      %v2327 = vadd.f32 %v2313, %v2326
      %2328 = vdwg.mxu0
      %2329 = vmatpush.bf16.msra.mxu0 %v2164
      %2330 = vmatpush.bf16.msra.mxu0 %v2162
      %2331 = vmatpush.bf16.msra.mxu0 %v2160
      %2332 = vmatpush.bf16.msra.mxu0 %v2158
      %2333 = vmatpush.bf16.msra.mxu0 %v2156
      %2334 = vmatpush.bf16.msra.mxu0 %v2154
      %2335 = vmatpush.bf16.msra.mxu0 %v2152
      %2336 = vmatpush.bf16.msra.mxu0 %v2150
      %2337 = vmatmul.bf16.gmra.mxu0 %v1853
      %v2338 = vpop.f32.mrf.mxu0
      %v2339 = vadd.f32 %v2325, %v2338
      %v2340 = vpop.f32.mrf.mxu0
      %v2341 = vadd.f32 %v2327, %v2340
      %2342 = vdwg.mxu0
      %2343 = vmatpush.bf16.msra.mxu0 %v2180
      %2344 = vmatpush.bf16.msra.mxu0 %v2178
      %2345 = vmatpush.bf16.msra.mxu0 %v2176
      %2346 = vmatpush.bf16.msra.mxu0 %v2174
      %2347 = vmatpush.bf16.msra.mxu0 %v2172
      %2348 = vmatpush.bf16.msra.mxu0 %v2170
      %2349 = vmatpush.bf16.msra.mxu0 %v2168
      %2350 = vmatpush.bf16.msra.mxu0 %v2166
      %2351 = vmatmul.bf16.gmra.mxu0 %v1854
      %v2352 = vpop.f32.mrf.mxu0
      %v2353 = vadd.f32 %v2339, %v2352
      %v2354 = vpop.f32.mrf.mxu0
      %v2355 = vadd.f32 %v2341, %v2354
      %2356 = vdwg.mxu0
      %vm2357 = vcmp.gt.f32.partialorder %v2297, 0.0
      %vm2358 = vcmp.gt.f32.partialorder %v2353, 0.0
      %vm2359 = vcmp.gt.f32.partialorder %v2299, 0.0
      %vm2360 = vcmp.gt.f32.partialorder %v2355, 0.0
      %v2361 = vmul.f32 %v2297, 0.2
      %v2362 = vmul.f32 %v2353, 0.2
      %v2363 = vmul.f32 %v2299, 0.2
      %v2364 = vmul.f32 %v2355, 0.2
      %v2365 = vsel %vm2357, %v2297, %v2361
      %v2366 = vsel %vm2358, %v2353, %v2362
      %v2367 = vsel %vm2359, %v2299, %v2363
      %v2368 = vsel %vm2360, %v2355, %v2364
      %v2369 = vpack.c.bf16 %v2367, %v2365
      %v2370 = vpack.c.bf16 %v2368, %v2366
      %v2371 = vld [vmem:[#allocation14] sm:$0xf]
      %v2372 = vld [vmem:[#allocation14 + $0x4] sm:$0xf]
      %v2373 = vld [vmem:[#allocation14 + $0x8] sm:$0xf]
      %v2374 = vld [vmem:[#allocation14 + $0xc] sm:$0xf]
      %v2375 = vld [vmem:[#allocation14 + $0x10] sm:$0xf]
      %v2376 = vld [vmem:[#allocation14 + $0x14] sm:$0xf]
      %v2377 = vld [vmem:[#allocation14 + $0x18] sm:$0xf]
      %v2378 = vld [vmem:[#allocation14 + $0x1c] sm:$0xf]
      %v2379 = vld [vmem:[#allocation14 + $0x20] sm:$0xf]
      %v2380 = vld [vmem:[#allocation14 + $0x24] sm:$0xf]
      %v2381 = vld [vmem:[#allocation14 + $0x28] sm:$0xf]
      %v2382 = vld [vmem:[#allocation14 + $0x2c] sm:$0xf]
      %v2383 = vld [vmem:[#allocation14 + $0x30] sm:$0xf]
      %v2384 = vld [vmem:[#allocation14 + $0x34] sm:$0xf]
      %v2385 = vld [vmem:[#allocation14 + $0x38] sm:$0xf]
      %v2386 = vld [vmem:[#allocation14 + $0x3c] sm:$0xf]
      %v2387 = vld [vmem:[#allocation14 + $0x40] sm:$0xf]
      %v2388 = vld [vmem:[#allocation14 + $0x44] sm:$0xf]
      %v2389 = vld [vmem:[#allocation14 + $0x48] sm:$0xf]
      %v2390 = vld [vmem:[#allocation14 + $0x4c] sm:$0xf]
      %v2391 = vld [vmem:[#allocation14 + $0x50] sm:$0xf]
      %v2392 = vld [vmem:[#allocation14 + $0x54] sm:$0xf]
      %v2393 = vld [vmem:[#allocation14 + $0x58] sm:$0xf]
      %v2394 = vld [vmem:[#allocation14 + $0x5c] sm:$0xf]
      %v2395 = vld [vmem:[#allocation14 + $0x60] sm:$0xf]
      %v2396 = vld [vmem:[#allocation14 + $0x64] sm:$0xf]
      %v2397 = vld [vmem:[#allocation14 + $0x68] sm:$0xf]
      %v2398 = vld [vmem:[#allocation14 + $0x6c] sm:$0xf]
      %v2399 = vld [vmem:[#allocation14 + $0x70] sm:$0xf]
      %v2400 = vld [vmem:[#allocation14 + $0x74] sm:$0xf]
      %v2401 = vld [vmem:[#allocation14 + $0x78] sm:$0xf]
      %v2402 = vld [vmem:[#allocation14 + $0x7c] sm:$0xf]
      %v2403 = vld [vmem:[%s9] sm:$0x1]
      %v2405 = vperm.slane %v2403, 0
      %v2439 = vunpack.c.l.b16 %v2371
      %v2440 = vunpack.c.l.b16 %v2372
      %v2441 = vunpack.c.l.b16 %v2373
      %v2442 = vunpack.c.l.b16 %v2374
      %v2443 = vunpack.c.l.b16 %v2375
      %v2444 = vunpack.c.l.b16 %v2376
      %v2445 = vunpack.c.l.b16 %v2377
      %v2446 = vunpack.c.l.b16 %v2378
      %v2447 = vunpack.c.l.b16 %v2379
      %v2448 = vunpack.c.l.b16 %v2380
      %v2449 = vunpack.c.l.b16 %v2381
      %v2450 = vunpack.c.l.b16 %v2382
      %v2451 = vunpack.c.l.b16 %v2383
      %v2452 = vunpack.c.l.b16 %v2384
      %v2453 = vunpack.c.l.b16 %v2385
      %v2454 = vunpack.c.l.b16 %v2386
      %v2455 = vunpack.c.l.b16 %v2387
      %v2456 = vunpack.c.l.b16 %v2388
      %v2457 = vunpack.c.l.b16 %v2389
      %v2458 = vunpack.c.l.b16 %v2390
      %v2459 = vunpack.c.l.b16 %v2391
      %v2460 = vunpack.c.l.b16 %v2392
      %v2461 = vunpack.c.l.b16 %v2393
      %v2462 = vunpack.c.l.b16 %v2394
      %v2463 = vunpack.c.l.b16 %v2395
      %v2464 = vunpack.c.l.b16 %v2396
      %v2465 = vunpack.c.l.b16 %v2397
      %v2466 = vunpack.c.l.b16 %v2398
      %v2467 = vunpack.c.l.b16 %v2399
      %v2468 = vunpack.c.l.b16 %v2400
      %v2469 = vunpack.c.l.b16 %v2401
      %v2470 = vunpack.c.l.b16 %v2402
      %v2471 = vpack.c.b16 %v2440, %v2439
      %v2472 = vpack.c.b16 %v2442, %v2441
      %v2473 = vpack.c.b16 %v2444, %v2443
      %v2474 = vpack.c.b16 %v2446, %v2445
      %v2475 = vpack.c.b16 %v2448, %v2447
      %v2476 = vpack.c.b16 %v2450, %v2449
      %v2477 = vpack.c.b16 %v2452, %v2451
      %v2478 = vpack.c.b16 %v2454, %v2453
      %v2479 = vpack.c.b16 %v2456, %v2455
      %v2480 = vpack.c.b16 %v2458, %v2457
      %v2481 = vpack.c.b16 %v2460, %v2459
      %v2482 = vpack.c.b16 %v2462, %v2461
      %v2483 = vpack.c.b16 %v2464, %v2463
      %v2484 = vpack.c.b16 %v2466, %v2465
      %v2485 = vpack.c.b16 %v2468, %v2467
      %v2486 = vpack.c.b16 %v2470, %v2469
      %2503 = vmatpush.bf16.msra.mxu0 %v2478
      %2504 = vmatpush.bf16.msra.mxu0 %v2477
      %2505 = vmatpush.bf16.msra.mxu0 %v2476
      %2506 = vmatpush.bf16.msra.mxu0 %v2475
      %2507 = vmatpush.bf16.msra.mxu0 %v2474
      %2508 = vmatpush.bf16.msra.mxu0 %v2473
      %2509 = vmatpush.bf16.msra.mxu0 %v2472
      %2510 = vmatpush.bf16.msra.mxu0 %v2471
      %2511 = vmatmul.bf16.gmra.mxu0 %v2369
      %v2512 = vpop.f32.mrf.mxu0
      %v2513 = vadd.f32 %v2405, %v2512
      %v2514 = vpop.f32.mrf.mxu0
      %v2515 = vadd.f32 %v2405, %v2514
      %2516 = vdwg.mxu0
      %2517 = vmatpush.bf16.msra.mxu0 %v2486
      %2518 = vmatpush.bf16.msra.mxu0 %v2485
      %2519 = vmatpush.bf16.msra.mxu0 %v2484
      %2520 = vmatpush.bf16.msra.mxu0 %v2483
      %2521 = vmatpush.bf16.msra.mxu0 %v2482
      %2522 = vmatpush.bf16.msra.mxu0 %v2481
      %2523 = vmatpush.bf16.msra.mxu0 %v2480
      %2524 = vmatpush.bf16.msra.mxu0 %v2479
      %2525 = vmatmul.bf16.gmra.mxu0 %v2370
      %v2526 = vpop.f32.mrf.mxu0
      %v2527 = vadd.f32 %v2513, %v2526
      %v2528 = vpop.f32.mrf.mxu0
      %v2529 = vadd.f32 %v2515, %v2528
      %2530 = vdwg.mxu0
      %v2531 = vxor.u32 %v2527, 2147483648
      %v2532 = vxor.u32 %v2529, 2147483648
      %v2533 = vmul.f32 %v2531, 1.442695
      %v2534 = vpow.pop %v2533
      %v2535 = vmul.f32 %v2532, 1.442695
      %v2536 = vpow.pop %v2535
      %v2537 = vadd.f32 %v2534, 1.0
      %v2538 = vadd.f32 %v2536, 1.0
      %v2539 = vrcp.pop %v2537
      %v2540 = vmul.f32 %v2537, %v2539
      %v2541 = vsub.f32 1.0, %v2540
      %v2542 = vmul.f32 %v2539, %v2541
      %v2543 = vadd.f32 %v2539, %v2542
      %vm2544 = vweird.f32 %v2537
      %vm2545 = vweird.f32 %v2539
      %vm2546 = vmor %vm2544, %vm2545
      %v2547 = vsel %vm2546, %v2539, %v2543
      %v2548 = vand.u32 2147483647, %v2537
      %vm2549 = vcmp.eq.f32.partialorder %v2548, 8.507059e+37
      %v2550 = vand.u32 %v2537, 2147483648
      %v2551 = vor.u32 1.1754944e-38, %v2550
      %v2552 = vsel %vm2549, %v2551, %v2547
      %v2553 = vmul.f32 1.0, %v2552
      %v2554 = vrcp.pop %v2538
      %v2555 = vmul.f32 %v2538, %v2554
      %v2556 = vsub.f32 1.0, %v2555
      %v2557 = vmul.f32 %v2554, %v2556
      %v2558 = vadd.f32 %v2554, %v2557
      %vm2559 = vweird.f32 %v2538
      %vm2560 = vweird.f32 %v2554
      %vm2561 = vmor %vm2559, %vm2560
      %v2562 = vsel %vm2561, %v2554, %v2558
      %v2563 = vand.u32 2147483647, %v2538
      %vm2564 = vcmp.eq.f32.partialorder %v2563, 8.507059e+37
      %v2565 = vand.u32 %v2538, 2147483648
      %v2566 = vor.u32 1.1754944e-38, %v2565
      %v2567 = vsel %vm2564, %v2566, %v2562
      %v2568 = vmul.f32 1.0, %v2567
      %2569 = vst [vmem:[#allocation15] sm:$0xff] %v2553
      %2570 = vst [vmem:[#allocation15 + $0x8] sm:$0xff] %v2568
    $region77: #{tpu_custom_call.1} parent=1 // pred_fallthru
      _
    // Predicated region
    $region78: #{tpu_custom_call.1} parent=1 // pred_check
      _
    $region79: #{tpu_custom_call.1} parent=1 // pred_check_branch
      %2572 = sbr.rel (0) target = $region81
    $region80: #{tpu_custom_call.1} parent=1 // pred_region
      %2574 = vsyncadd [#allocation5], 0
      %s2575 = sshll.u32 [#allocation15], 4
      %s2576 = int_to_ptr.vmem [resolvable:$true] %s2575
      %s2577 = sshll.u32 %s10, 4
      %s2578 = int_to_ptr.hbm [resolvable:$true] %s2577
      %2583 = dma.vmem_to_hbm [thread:$0]  %s2576, 256, %s2578, [#allocation5], 128, 128, 8
    $region81: #{tpu_custom_call.1} parent=1 // pred_fallthru
      _
    // Predicated region
    $region82: #{tpu_custom_call.1} parent=1 // pred_check
      _
    $region83: #{tpu_custom_call.1} parent=1 // pred_check_branch
      %2585 = sbr.rel (0) target = $region85
    $region84: #{tpu_custom_call.1} parent=1 // pred_region
      %2587 = dma.done [#allocation5], 256
    $region85: #{tpu_custom_call.1} parent=1 // pred_fallthru
      _
    %2588 = vsyncpa [#allocation4], 1
    %2589 = vsyncpa [#allocation7], 1
    %2590 = vsyncpa [#allocation10], 1
    %2591 = vsyncpa [#allocation13], 1
    %2592 = vsyncpa [#allocation5], 1

</llo_original>
